<compile_context>
chip_gen: v6e
topology: v6e:2x2x1
jax: 0.10.0
libtpu: 0.0.40
codegen_flags: <defaults>
</compile_context>

<pallas_src>
import jax
import jax.numpy as jnp
from jax.experimental import pallas as pl
from jax.experimental.pallas import tpu as pltpu


# ------------------------- shared channel-MLP helper -------------------------

def _mlp_cs(v_cs, w1, b1, w2, b2):
    """conv1x1(+folded BN) -> ReLU -> conv1x1(+folded BN) on channels-first data.

    v_cs: (C_in, S) f32.  w1: (C_mid, C_in) bf16, b1: (C_mid, 1) f32,
    w2: (C_out, C_mid) bf16, b2: (C_out, 1) f32.  bf16 MXU operands, f32 accum.
    """
    h = jnp.dot(w1, v_cs.astype(jnp.bfloat16), preferred_element_type=jnp.float32) + b1
    h = jnp.maximum(h, 0.0)
    return jnp.dot(w2, h.astype(jnp.bfloat16), preferred_element_type=jnp.float32) + b2


# ------------------------------ Pallas kernels -------------------------------

def _pool_sum_kernel(x_ref, r_ref, sum_ref):
    """Accumulate sum over HW of (x + residual) into a (1, 1, C, 1) block."""
    @pl.when(pl.program_id(2) == 0)
    def _():
        sum_ref[...] = jnp.zeros_like(sum_ref)
    s = jnp.sum(x_ref[0] + r_ref[0], axis=-1, keepdims=True)        # (C, 1)
    sum_ref[...] += s[None, None]


def _stage1_sum_kernel(x_ref, r_ref, xg_ref,
                       w1_ref, b1_ref, w2_ref, b2_ref,
                       xi_sum_ref):
    """wei = sigmoid(local_att(x+r) + xg); accumulate sum(xi) only (no xi write)."""
    @pl.when(pl.program_id(2) == 0)
    def _():
        xi_sum_ref[...] = jnp.zeros_like(xi_sum_ref)
    x = x_ref[0]                                                     # (C, ts) f32
    r = r_ref[0]
    d = x - r
    xl = _mlp_cs(x + r, w1_ref[...], b1_ref[...], w2_ref[...], b2_ref[...])
    wei = jax.nn.sigmoid(xl + xg_ref[...])                           # (C,1) broadcasts
    xi = r + d * wei
    xi_sum_ref[...] += jnp.sum(xi, axis=-1, keepdims=True)[None, None]


def _stage2_kernel(x_ref, r_ref, xg_ref, xg2_ref,
                   l1w1_ref, l1b1_ref, l1w2_ref, l1b2_ref,
                   l2w1_ref, l2b1_ref, l2w2_ref, l2b2_ref,
                   out_ref):
    """Recompute wei/xi from x,r,xg; wei2 = sigmoid(local_att2(xi) + xg2); gate."""
    x = x_ref[0]
    r = r_ref[0]
    d = x - r
    xl = _mlp_cs(x + r, l1w1_ref[...], l1b1_ref[...], l1w2_ref[...], l1b2_ref[...])
    wei = jax.nn.sigmoid(xl + xg_ref[...])
    xi = r + d * wei
    xl2 = _mlp_cs(xi, l2w1_ref[...], l2b1_ref[...], l2w2_ref[...], l2b2_ref[...])
    wei2 = jax.nn.sigmoid(xl2 + xg2_ref[...])
    out_ref[0] = (r + d * wei2).astype(out_ref.dtype)


def _fused_kernel(x_ref, r_ref, pool_ref,
                  l1w1_ref, l1b1_ref, l1w2_ref, l1b2_ref,
                  gw1_ref, gb1_ref, gw2_ref, gb2_ref,
                  l2w1_ref, l2b1_ref, l2w2_ref, l2b2_ref,
                  out_ref):
    """Whole-problem fused forward on a (C, B*HW) slab (small-problem fast path).

    pool_ref: (B*HW, B) f32 block mean-pool matrix (column b = 1/HW over sample b).
    """
    x = x_ref[...]                                                   # (C, S) f32
    r = r_ref[...]
    pool = pool_ref[...]
    d = x - r
    xa = x + r
    # stage-1 global gate: per-sample mean pool -> MLP -> batch mean
    pooled = jnp.dot(xa, pool, preferred_element_type=jnp.float32)   # (C, B)
    yg = _mlp_cs(pooled, gw1_ref[...], gb1_ref[...], gw2_ref[...], gb2_ref[...])
    xg = jnp.mean(yg, axis=1, keepdims=True)                         # (C, 1)
    # stage-1 local gate + mix
    xl = _mlp_cs(xa, l1w1_ref[...], l1b1_ref[...], l1w2_ref[...], l1b2_ref[...])
    wei = jax.nn.sigmoid(xl + xg)
    xi = r + d * wei
    # stage-2 global gate (global_att weights are reused, as in the torch code)
    pooled2 = jnp.dot(xi, pool, preferred_element_type=jnp.float32)  # (C, B)
    yg2 = _mlp_cs(pooled2, gw1_ref[...], gb1_ref[...], gw2_ref[...], gb2_ref[...])
    xg2 = jnp.mean(yg2, axis=1, keepdims=True)
    # stage-2 local gate + final mix
    xl2 = _mlp_cs(xi, l2w1_ref[...], l2b1_ref[...], l2w2_ref[...], l2b2_ref[...])
    wei2 = jax.nn.sigmoid(xl2 + xg2)
    out_ref[...] = (r + d * wei2).astype(out_ref.dtype)


# ------------------------------ spec helpers ---------------------------------

def _resident_spec(shape, ngrid):
    """Whole-array block with a constant index_map: DMA'd once, stays in VMEM."""
    zeros = (0,) * len(shape)
    if ngrid == 1:
        return pl.BlockSpec(shape, lambda i: zeros)
    if ngrid == 2:
        return pl.BlockSpec(shape, lambda b, t: zeros)
    return pl.BlockSpec(shape, lambda b, p, t: zeros)


def _pick_hw_tile(hw, c):
    """Largest multiple-of-128 divisor of hw, footprint-capped (<= 2 MiB per tile,
    <= 4096 lanes) so double-buffered tiles stay tiny vs v7x's 64 MiB VMEM."""
    if hw % 128 != 0:
        return hw                        # fallback: single (possibly masked) tile
    cap = max(128, min(4096, ((2 << 20) // (4 * c)) // 128 * 128))
    best, t = 128, 128
    while t <= min(hw, cap):
        if hw % t == 0:
            best = t
        t += 128
    return best


def _vmem_limit(n_tiled_streams, tile_bytes, resident_bytes):
    """Scoped-VMEM limit derived from the real footprint (x2 headroom), clamped
    so it never crowds v7x's 64 MiB physical VMEM."""
    footprint = 2 * n_tiled_streams * tile_bytes + resident_bytes
    return int(min(max(2 * footprint + (2 << 20), 16 << 20), 48 << 20))


def _global_gate(pooled_bc, w1, b1, w2, b2):
    """Batch-mean of the per-sample global-attention MLP: (B, C) f32 -> (C, 1).

    Matches torch's global_att(cat([t, t], 0)).mean(dim=0, keepdim=True): the
    duplication is a no-op under the mean with eval-mode BN, so it equals the
    mean over the B per-sample results.
    """
    y = _mlp_cs(pooled_bc.T, w1, b1, w2, b2)                         # (C, B)
    return jnp.mean(y, axis=1, keepdims=True)                        # (C, 1)


# ------------------------------ forward paths --------------------------------

def _iaff_fused(x, r, params, B, C, HW):
    """Single fused pallas_call for problems that fit in VMEM (x/r read once)."""
    (l1w1, l1b1, l1w2, l1b2, gw1, gb1, gw2, gb2, l2w1, l2b1, l2w2, l2b2) = params
    S = B * HW
    xt = x.transpose(1, 0, 2).reshape(C, S)                          # lane-dense slab
    rt = r.transpose(1, 0, 2).reshape(C, S)
    # per-sample mean-pool matrix: column b is 1/HW over sample b's lane range
    pool = jnp.repeat(jnp.eye(B, dtype=jnp.float32), HW, axis=0) / float(HW)

    ins = (xt, rt, pool,
           l1w1, l1b1, l1w2, l1b2, gw1, gb1, gw2, gb2, l2w1, l2b1, l2w2, l2b2)
    in_specs = [_resident_spec(a.shape, 1) for a in ins]

    t_bytes = C * S * 4
    vmem_limit = int(min(max(12 * t_bytes + S * B * 4 + (4 << 20), 16 << 20), 48 << 20))

    out = pl.pallas_call(
        _fused_kernel,
        grid=(1,),
        in_specs=in_specs,
        out_specs=_resident_spec((C, S), 1),
        out_shape=jax.ShapeDtypeStruct((C, S), x.dtype),
        compiler_params=pltpu.CompilerParams(
            dimension_semantics=("arbitrary",),
            vmem_limit_bytes=vmem_limit),
    )(*ins)
    return out.reshape(C, B, HW).transpose(1, 0, 2)                  # back to (B, C, HW)


def _iaff_tiled(x, r, params, B, C, HW):
    """Three-phase tiled path for large problems (7 HBM tensor passes total)."""
    (l1w1, l1b1, l1w2, l1b2, gw1, gb1, gw2, gb2, l2w1, l2b1, l2w2, l2b2) = params

    ts = _pick_hw_tile(HW, C)
    num_tiles = HW // ts
    # Split the accumulated tile axis by 2 ("parallel") so both v7x cores work
    # even at B == 1; no-op cost on single-core v5e/v6e.
    P = 2 if (num_tiles >= 2 and num_tiles % 2 == 0) else 1
    tps = num_tiles // P

    tile_bytes = C * ts * 4
    resident_bytes = 64 * 1024                                       # gates + folded weights
    acc_params = pltpu.CompilerParams(
        dimension_semantics=("parallel", "parallel", "arbitrary"),
        vmem_limit_bytes=_vmem_limit(3, tile_bytes, resident_bytes))
    par_params = pltpu.CompilerParams(
        dimension_semantics=("parallel", "parallel"),
        vmem_limit_bytes=_vmem_limit(3, tile_bytes, resident_bytes))

    tile_acc = pl.BlockSpec((1, C, ts), lambda b, p, t: (b, 0, p * tps + t))
    sum_spec = pl.BlockSpec((1, 1, C, 1), lambda b, p, t: (b, p, 0, 0))
    tile_par = pl.BlockSpec((1, C, ts), lambda b, t: (b, 0, t))
    res3 = lambda a: _resident_spec(a.shape, 3)
    res2 = lambda a: _resident_spec(a.shape, 2)

    grid_acc = (B, P, tps)
    grid_par = (B, num_tiles)

    # ---- phase 1: per-sample (partial) sums of xa = x + r --------------------
    xa_psum = pl.pallas_call(
        _pool_sum_kernel,
        grid=grid_acc,
        in_specs=[tile_acc, tile_acc],
        out_specs=sum_spec,
        out_shape=jax.ShapeDtypeStruct((B, P, C, 1), jnp.float32),
        compiler_params=acc_params,
    )(x, r)
    xg = _global_gate(jnp.sum(xa_psum, axis=1)[:, :, 0] / float(HW),
                      gw1, gb1, gw2, gb2)                            # (C, 1)

    # ---- phase 2: per-sample (partial) sums of xi (xi never written to HBM) --
    xi_psum = pl.pallas_call(
        _stage1_sum_kernel,
        grid=grid_acc,
        in_specs=[tile_acc, tile_acc, res3(xg),
                  res3(l1w1), res3(l1b1), res3(l1w2), res3(l1b2)],
        out_specs=sum_spec,
        out_shape=jax.ShapeDtypeStruct((B, P, C, 1), jnp.float32),
        compiler_params=acc_params,
    )(x, r, xg, l1w1, l1b1, l1w2, l1b2)
    # NOTE: the original module reuses self.global_att in stage 2 (not global_att2).
    xg2 = _global_gate(jnp.sum(xi_psum, axis=1)[:, :, 0] / float(HW),
                       gw1, gb1, gw2, gb2)                           # (C, 1)

    # ---- phase 3: recompute wei/xi in-register, apply second gate -> output --
    out = pl.pallas_call(
        _stage2_kernel,
        grid=grid_par,
        in_specs=[tile_par, tile_par, res2(xg), res2(xg2),
                  res2(l1w1), res2(l1b1), res2(l1w2), res2(l1b2),
                  res2(l2w1), res2(l2b1), res2(l2w2), res2(l2b2)],
        out_specs=tile_par,
        out_shape=jax.ShapeDtypeStruct((B, C, HW), x.dtype),
        compiler_params=par_params,
    )(x, r, xg, xg2, l1w1, l1b1, l1w2, l1b2, l2w1, l2b1, l2w2, l2b2)
    return out


def iaff_forward(x_nchw, res_nchw, params, force_tiled=False):
    """iAFF forward.  x/res: (B, C, H, W) f32 -> (B, C, H, W).  Eval-mode (folded) BN."""
    B, C, H, W = x_nchw.shape
    HW = H * W
    x = x_nchw.reshape(B, C, HW)         # channels on sublanes, HW on lanes
    r = res_nchw.reshape(B, C, HW)

    tensor_bytes = B * C * HW * 4
    pool_bytes = B * B * HW * 4
    use_fused = (not force_tiled) and tensor_bytes <= (2 << 20) and pool_bytes <= (1 << 20)

    if use_fused:
        out = _iaff_fused(x, r, params, B, C, HW)
    else:
        out = _iaff_tiled(x, r, params, B, C, HW)
    return out.reshape(B, C, H, W)


# ---------------------- deterministic parameter setup ------------------------

def _fold_conv_bn(w, b, gamma, beta, mean, var, eps=1e-5):
    """Fold a 1x1 conv (w: (out,in), b: (out,)) with an eval-mode BatchNorm2d."""
    scale = gamma / jnp.sqrt(var + eps)
    w_fold = (w * scale[:, None]).astype(jnp.bfloat16)
    b_fold = ((b - mean) * scale + beta).reshape(-1, 1).astype(jnp.float32)
    return w_fold, b_fold


def _conv_bn_params(key, c_in, c_out):
    kw, kb, kg, kbe, km, kv = jax.random.split(key, 6)
    w = 0.1 * jax.random.normal(kw, (c_out, c_in), jnp.float32)
    b = 0.1 * jax.random.normal(kb, (c_out,), jnp.float32)
    gamma = 1.0 + 0.1 * jax.random.normal(kg, (c_out,), jnp.float32)
    beta = 0.1 * jax.random.normal(kbe, (c_out,), jnp.float32)
    mean = 0.1 * jax.random.normal(km, (c_out,), jnp.float32)
    var = 0.5 + jnp.abs(jax.random.normal(kv, (c_out,), jnp.float32))
    return _fold_conv_bn(w, b, gamma, beta, mean, var)


def init_iaff_params(key, channels=64, r=4):
    inter = channels // r
    keys = jax.random.split(key, 6)
    local1 = _conv_bn_params(keys[0], channels, inter) + _conv_bn_params(keys[1], inter, channels)
    glob = _conv_bn_params(keys[2], channels, inter) + _conv_bn_params(keys[3], inter, channels)
    local2 = _conv_bn_params(keys[4], channels, inter) + _conv_bn_params(keys[5], inter, channels)
    # global_att2 exists in the torch __init__ but the forward never uses it.
    return local1 + glob + local2        # 12 arrays


# ------------------------------ pure-JAX reference ---------------------------

def _mlp_bcs(v_bcs, w1, b1, w2, b2):
    h = jnp.einsum("ij,bjs->bis", w1, v_bcs.astype(jnp.bfloat16),
                   preferred_element_type=jnp.float32) + b1[None]
    h = jnp.maximum(h, 0.0)
    return jnp.einsum("ij,bjs->bis", w2, h.astype(jnp.bfloat16),
                      preferred_element_type=jnp.float32) + b2[None]


def iaff_reference(x, r, params):
    """Plain-JAX reference on (B, C, HW) data with the same mixed-precision policy."""
    (l1w1, l1b1, l1w2, l1b2, gw1, gb1, gw2, gb2, l2w1, l2b1, l2w2, l2b2) = params
    HW = x.shape[-1]
    d = x - r
    xa = x + r
    xl = _mlp_bcs(xa, l1w1, l1b1, l1w2, l1b2)
    xg = _global_gate(jnp.sum(xa, axis=-1) / HW, gw1, gb1, gw2, gb2)
    wei = jax.nn.sigmoid(xl + xg[None])
    xi = r + d * wei
    xl2 = _mlp_bcs(xi, l2w1, l2b1, l2w2, l2b2)
    xg2 = _global_gate(jnp.sum(xi, axis=-1) / HW, gw1, gb1, gw2, gb2)   # global_att reused
    wei2 = jax.nn.sigmoid(xl2 + xg2[None])
    return r + d * wei2


# ----------------------------------- main ------------------------------------

if __name__ == "__main__":
    B, C, H, W, R = 2, 64, 16, 16, 4     # module defaults: channels=64, r=4

    key = jax.random.PRNGKey(0)
    kx, kr, kp = jax.random.split(key, 3)
    x = jax.random.normal(kx, (B, C, H, W), jnp.float32)
    residual = jax.random.normal(kr, (B, C, H, W), jnp.float32)
    params = init_iaff_params(kp, channels=C, r=R)

    ref = iaff_reference(x.reshape(B, C, H * W), residual.reshape(B, C, H * W), params)
    ref = ref.reshape(B, C, H, W)

    fwd = jax.jit(iaff_forward, static_argnames=("force_tiled",))
    out_fused = jax.block_until_ready(fwd(x, residual, params))                  # fused fast path
    out_tiled = jax.block_until_ready(fwd(x, residual, params, force_tiled=True))  # tiled path
    assert out_fused.shape == (B, C, H, W)
    assert out_tiled.shape == (B, C, H, W)

    for out in (out_fused, out_tiled):
        err = float(jnp.max(jnp.abs(out - ref)))
        assert jnp.allclose(out, ref, atol=1e-3, rtol=1e-3), f"max abs err {err}"

    print("KERNEL_OK")
</pallas_src>

<mosaic_0001>
module attributes {stable_mosaic.version = 11 : i64} {
  func.func @_fused_kernel(%arg0: i32, %arg1: memref<64x512xf32, #tpu.memory_space<vmem>>, %arg2: memref<64x512xf32, #tpu.memory_space<vmem>>, %arg3: memref<512x2xf32, #tpu.memory_space<vmem>>, %arg4: memref<16x64xbf16, #tpu.memory_space<vmem>>, %arg5: memref<16x1xf32, #tpu.memory_space<vmem>>, %arg6: memref<64x16xbf16, #tpu.memory_space<vmem>>, %arg7: memref<64x1xf32, #tpu.memory_space<vmem>>, %arg8: memref<16x64xbf16, #tpu.memory_space<vmem>>, %arg9: memref<16x1xf32, #tpu.memory_space<vmem>>, %arg10: memref<64x16xbf16, #tpu.memory_space<vmem>>, %arg11: memref<64x1xf32, #tpu.memory_space<vmem>>, %arg12: memref<16x64xbf16, #tpu.memory_space<vmem>>, %arg13: memref<16x1xf32, #tpu.memory_space<vmem>>, %arg14: memref<64x16xbf16, #tpu.memory_space<vmem>>, %arg15: memref<64x1xf32, #tpu.memory_space<vmem>>, %arg16: memref<64x512xf32, #tpu.memory_space<vmem>>) attributes {dimension_semantics = [#tpu.dimension_semantics<arbitrary>], iteration_bounds = array<i64: 1>, scalar_prefetch = 0 : i64, scratch_operands = 0 : i64, tpu.core_type = #tpu.core_type<tc>, window_params = [{pipeline_mode = #tpu.pipeline_mode<synchronous>, transform_indices = @transform_0, window_bounds = array<i64: 64, 512>}, {pipeline_mode = #tpu.pipeline_mode<synchronous>, transform_indices = @transform_1, window_bounds = array<i64: 64, 512>}, {pipeline_mode = #tpu.pipeline_mode<synchronous>, transform_indices = @transform_2, window_bounds = array<i64: 512, 2>}, {pipeline_mode = #tpu.pipeline_mode<synchronous>, transform_indices = @transform_3, window_bounds = array<i64: 16, 64>}, {pipeline_mode = #tpu.pipeline_mode<synchronous>, transform_indices = @transform_4, window_bounds = array<i64: 16, 1>}, {pipeline_mode = #tpu.pipeline_mode<synchronous>, transform_indices = @transform_5, window_bounds = array<i64: 64, 16>}, {pipeline_mode = #tpu.pipeline_mode<synchronous>, transform_indices = @transform_6, window_bounds = array<i64: 64, 1>}, {pipeline_mode = #tpu.pipeline_mode<synchronous>, transform_indices = @transform_7, window_bounds = array<i64: 16, 64>}, {pipeline_mode = #tpu.pipeline_mode<synchronous>, transform_indices = @transform_8, window_bounds = array<i64: 16, 1>}, {pipeline_mode = #tpu.pipeline_mode<synchronous>, transform_indices = @transform_9, window_bounds = array<i64: 64, 16>}, {pipeline_mode = #tpu.pipeline_mode<synchronous>, transform_indices = @transform_10, window_bounds = array<i64: 64, 1>}, {pipeline_mode = #tpu.pipeline_mode<synchronous>, transform_indices = @transform_11, window_bounds = array<i64: 16, 64>}, {pipeline_mode = #tpu.pipeline_mode<synchronous>, transform_indices = @transform_12, window_bounds = array<i64: 16, 1>}, {pipeline_mode = #tpu.pipeline_mode<synchronous>, transform_indices = @transform_13, window_bounds = array<i64: 64, 16>}, {pipeline_mode = #tpu.pipeline_mode<synchronous>, transform_indices = @transform_14, window_bounds = array<i64: 64, 1>}, {pipeline_mode = #tpu.pipeline_mode<synchronous>, transform_indices = @transform_15, window_bounds = array<i64: 64, 512>}]} {
    %c0 = arith.constant 0 : index
    %c0_0 = arith.constant 0 : index
    %0 = vector.load %arg1[%c0, %c0_0] : memref<64x512xf32, #tpu.memory_space<vmem>>, vector<64x512xf32>
    %c0_1 = arith.constant 0 : index
    %c0_2 = arith.constant 0 : index
    %1 = vector.load %arg2[%c0_1, %c0_2] : memref<64x512xf32, #tpu.memory_space<vmem>>, vector<64x512xf32>
    %c0_3 = arith.constant 0 : index
    %c0_4 = arith.constant 0 : index
    %2 = vector.load %arg3[%c0_3, %c0_4] : memref<512x2xf32, #tpu.memory_space<vmem>>, vector<512x2xf32>
    %3 = arith.subf %0, %1 : vector<64x512xf32>
    %4 = arith.addf %0, %1 : vector<64x512xf32>
    %cst = arith.constant dense<0.000000e+00> : vector<64x2xf32>
    %5 = tpu.matmul %4, %2, %cst {dimension_numbers = #tpu.dot_dimension_numbers<[1], [0], [0], [1], [0, 0, 1, 1], [], []>} : vector<64x512xf32>, vector<512x2xf32>, vector<64x2xf32> -> vector<64x2xf32>
    %c0_5 = arith.constant 0 : index
    %c0_6 = arith.constant 0 : index
    %6 = vector.load %arg8[%c0_5, %c0_6] : memref<16x64xbf16, #tpu.memory_space<vmem>>, vector<16x64xbf16>
    %c0_7 = arith.constant 0 : index
    %c0_8 = arith.constant 0 : index
    %7 = vector.load %arg9[%c0_7, %c0_8] : memref<16x1xf32, #tpu.memory_space<vmem>>, vector<16x1xf32>
    %c0_9 = arith.constant 0 : index
    %c0_10 = arith.constant 0 : index
    %8 = vector.load %arg10[%c0_9, %c0_10] : memref<64x16xbf16, #tpu.memory_space<vmem>>, vector<64x16xbf16>
    %c0_11 = arith.constant 0 : index
    %c0_12 = arith.constant 0 : index
    %9 = vector.load %arg11[%c0_11, %c0_12] : memref<64x1xf32, #tpu.memory_space<vmem>>, vector<64x1xf32>
    %10 = arith.truncf %5 : vector<64x2xf32> to vector<64x2xbf16>
    %cst_13 = arith.constant dense<0.000000e+00> : vector<16x2xf32>
    %11 = tpu.matmul %6, %10, %cst_13 {dimension_numbers = #tpu.dot_dimension_numbers<[1], [0], [0], [1], [0, 0, 1, 1], [], []>} : vector<16x64xbf16>, vector<64x2xbf16>, vector<16x2xf32> -> vector<16x2xf32>
    %12 = vector.broadcast %7 : vector<16x1xf32> to vector<16x2xf32>
    %13 = arith.addf %11, %12 : vector<16x2xf32>
    %cst_14 = arith.constant 0.000000e+00 : f32
    %14 = vector.broadcast %cst_14 : f32 to vector<16x2xf32>
    %15 = arith.maximumf %13, %14 : vector<16x2xf32>
    %16 = arith.truncf %15 : vector<16x2xf32> to vector<16x2xbf16>
    %cst_15 = arith.constant dense<0.000000e+00> : vector<64x2xf32>
    %17 = tpu.matmul %8, %16, %cst_15 {dimension_numbers = #tpu.dot_dimension_numbers<[1], [0], [0], [1], [0, 0, 1, 1], [], []>} : vector<64x16xbf16>, vector<16x2xbf16>, vector<64x2xf32> -> vector<64x2xf32>
    %18 = vector.broadcast %9 : vector<64x1xf32> to vector<64x2xf32>
    %19 = arith.addf %17, %18 : vector<64x2xf32>
    %cst_16 = arith.constant dense<0.000000e+00> : vector<64xf32>
    %20 = vector.multi_reduction <add>, %19, %cst_16 [1] : vector<64x2xf32> to vector<64xf32>
    %21 = vector.shape_cast %20 : vector<64xf32> to vector<64x1xf32>
    %cst_17 = arith.constant 2.000000e+00 : f32
    %22 = vector.broadcast %cst_17 : f32 to vector<64x1xf32>
    %23 = arith.divf %21, %22 : vector<64x1xf32>
    %c0_18 = arith.constant 0 : index
    %c0_19 = arith.constant 0 : index
    %24 = vector.load %arg4[%c0_18, %c0_19] : memref<16x64xbf16, #tpu.memory_space<vmem>>, vector<16x64xbf16>
    %c0_20 = arith.constant 0 : index
    %c0_21 = arith.constant 0 : index
    %25 = vector.load %arg5[%c0_20, %c0_21] : memref<16x1xf32, #tpu.memory_space<vmem>>, vector<16x1xf32>
    %c0_22 = arith.constant 0 : index
    %c0_23 = arith.constant 0 : index
    %26 = vector.load %arg6[%c0_22, %c0_23] : memref<64x16xbf16, #tpu.memory_space<vmem>>, vector<64x16xbf16>
    %c0_24 = arith.constant 0 : index
    %c0_25 = arith.constant 0 : index
    %27 = vector.load %arg7[%c0_24, %c0_25] : memref<64x1xf32, #tpu.memory_space<vmem>>, vector<64x1xf32>
    %28 = arith.truncf %4 : vector<64x512xf32> to vector<64x512xbf16>
    %cst_26 = arith.constant dense<0.000000e+00> : vector<16x512xf32>
    %29 = tpu.matmul %24, %28, %cst_26 {dimension_numbers = #tpu.dot_dimension_numbers<[1], [0], [0], [1], [0, 0, 1, 1], [], []>} : vector<16x64xbf16>, vector<64x512xbf16>, vector<16x512xf32> -> vector<16x512xf32>
    %30 = vector.broadcast %25 : vector<16x1xf32> to vector<16x512xf32>
    %31 = arith.addf %29, %30 : vector<16x512xf32>
    %cst_27 = arith.constant 0.000000e+00 : f32
    %32 = vector.broadcast %cst_27 : f32 to vector<16x512xf32>
    %33 = arith.maximumf %31, %32 : vector<16x512xf32>
    %34 = arith.truncf %33 : vector<16x512xf32> to vector<16x512xbf16>
    %cst_28 = arith.constant dense<0.000000e+00> : vector<64x512xf32>
    %35 = tpu.matmul %26, %34, %cst_28 {dimension_numbers = #tpu.dot_dimension_numbers<[1], [0], [0], [1], [0, 0, 1, 1], [], []>} : vector<64x16xbf16>, vector<16x512xbf16>, vector<64x512xf32> -> vector<64x512xf32>
    %36 = vector.broadcast %27 : vector<64x1xf32> to vector<64x512xf32>
    %37 = arith.addf %35, %36 : vector<64x512xf32>
    %38 = vector.broadcast %23 : vector<64x1xf32> to vector<64x512xf32>
    %39 = arith.addf %37, %38 : vector<64x512xf32>
    %40 = arith.negf %39 : vector<64x512xf32>
    %41 = math.exp %40 : vector<64x512xf32>
    %cst_29 = arith.constant 1.000000e+00 : f32
    %42 = vector.broadcast %cst_29 : f32 to vector<64x512xf32>
    %43 = arith.addf %42, %41 : vector<64x512xf32>
    %44 = arith.divf %42, %43 : vector<64x512xf32>
    %45 = arith.mulf %3, %44 : vector<64x512xf32>
    %46 = arith.addf %1, %45 : vector<64x512xf32>
    %cst_30 = arith.constant dense<0.000000e+00> : vector<64x2xf32>
    %47 = tpu.matmul %46, %2, %cst_30 {dimension_numbers = #tpu.dot_dimension_numbers<[1], [0], [0], [1], [0, 0, 1, 1], [], []>} : vector<64x512xf32>, vector<512x2xf32>, vector<64x2xf32> -> vector<64x2xf32>
    %c0_31 = arith.constant 0 : index
    %c0_32 = arith.constant 0 : index
    %48 = vector.load %arg8[%c0_31, %c0_32] : memref<16x64xbf16, #tpu.memory_space<vmem>>, vector<16x64xbf16>
    %c0_33 = arith.constant 0 : index
    %c0_34 = arith.constant 0 : index
    %49 = vector.load %arg9[%c0_33, %c0_34] : memref<16x1xf32, #tpu.memory_space<vmem>>, vector<16x1xf32>
    %c0_35 = arith.constant 0 : index
    %c0_36 = arith.constant 0 : index
    %50 = vector.load %arg10[%c0_35, %c0_36] : memref<64x16xbf16, #tpu.memory_space<vmem>>, vector<64x16xbf16>
    %c0_37 = arith.constant 0 : index
    %c0_38 = arith.constant 0 : index
    %51 = vector.load %arg11[%c0_37, %c0_38] : memref<64x1xf32, #tpu.memory_space<vmem>>, vector<64x1xf32>
    %52 = arith.truncf %47 : vector<64x2xf32> to vector<64x2xbf16>
    %cst_39 = arith.constant dense<0.000000e+00> : vector<16x2xf32>
    %53 = tpu.matmul %48, %52, %cst_39 {dimension_numbers = #tpu.dot_dimension_numbers<[1], [0], [0], [1], [0, 0, 1, 1], [], []>} : vector<16x64xbf16>, vector<64x2xbf16>, vector<16x2xf32> -> vector<16x2xf32>
    %54 = vector.broadcast %49 : vector<16x1xf32> to vector<16x2xf32>
    %55 = arith.addf %53, %54 : vector<16x2xf32>
    %cst_40 = arith.constant 0.000000e+00 : f32
    %56 = vector.broadcast %cst_40 : f32 to vector<16x2xf32>
    %57 = arith.maximumf %55, %56 : vector<16x2xf32>
    %58 = arith.truncf %57 : vector<16x2xf32> to vector<16x2xbf16>
    %cst_41 = arith.constant dense<0.000000e+00> : vector<64x2xf32>
    %59 = tpu.matmul %50, %58, %cst_41 {dimension_numbers = #tpu.dot_dimension_numbers<[1], [0], [0], [1], [0, 0, 1, 1], [], []>} : vector<64x16xbf16>, vector<16x2xbf16>, vector<64x2xf32> -> vector<64x2xf32>
    %60 = vector.broadcast %51 : vector<64x1xf32> to vector<64x2xf32>
    %61 = arith.addf %59, %60 : vector<64x2xf32>
    %cst_42 = arith.constant dense<0.000000e+00> : vector<64xf32>
    %62 = vector.multi_reduction <add>, %61, %cst_42 [1] : vector<64x2xf32> to vector<64xf32>
    %63 = vector.shape_cast %62 : vector<64xf32> to vector<64x1xf32>
    %cst_43 = arith.constant 2.000000e+00 : f32
    %64 = vector.broadcast %cst_43 : f32 to vector<64x1xf32>
    %65 = arith.divf %63, %64 : vector<64x1xf32>
    %c0_44 = arith.constant 0 : index
    %c0_45 = arith.constant 0 : index
    %66 = vector.load %arg12[%c0_44, %c0_45] : memref<16x64xbf16, #tpu.memory_space<vmem>>, vector<16x64xbf16>
    %c0_46 = arith.constant 0 : index
    %c0_47 = arith.constant 0 : index
    %67 = vector.load %arg13[%c0_46, %c0_47] : memref<16x1xf32, #tpu.memory_space<vmem>>, vector<16x1xf32>
    %c0_48 = arith.constant 0 : index
    %c0_49 = arith.constant 0 : index
    %68 = vector.load %arg14[%c0_48, %c0_49] : memref<64x16xbf16, #tpu.memory_space<vmem>>, vector<64x16xbf16>
    %c0_50 = arith.constant 0 : index
    %c0_51 = arith.constant 0 : index
    %69 = vector.load %arg15[%c0_50, %c0_51] : memref<64x1xf32, #tpu.memory_space<vmem>>, vector<64x1xf32>
    %70 = arith.truncf %46 : vector<64x512xf32> to vector<64x512xbf16>
    %cst_52 = arith.constant dense<0.000000e+00> : vector<16x512xf32>
    %71 = tpu.matmul %66, %70, %cst_52 {dimension_numbers = #tpu.dot_dimension_numbers<[1], [0], [0], [1], [0, 0, 1, 1], [], []>} : vector<16x64xbf16>, vector<64x512xbf16>, vector<16x512xf32> -> vector<16x512xf32>
    %72 = vector.broadcast %67 : vector<16x1xf32> to vector<16x512xf32>
    %73 = arith.addf %71, %72 : vector<16x512xf32>
    %cst_53 = arith.constant 0.000000e+00 : f32
    %74 = vector.broadcast %cst_53 : f32 to vector<16x512xf32>
    %75 = arith.maximumf %73, %74 : vector<16x512xf32>
    %76 = arith.truncf %75 : vector<16x512xf32> to vector<16x512xbf16>
    %cst_54 = arith.constant dense<0.000000e+00> : vector<64x512xf32>
    %77 = tpu.matmul %68, %76, %cst_54 {dimension_numbers = #tpu.dot_dimension_numbers<[1], [0], [0], [1], [0, 0, 1, 1], [], []>} : vector<64x16xbf16>, vector<16x512xbf16>, vector<64x512xf32> -> vector<64x512xf32>
    %78 = vector.broadcast %69 : vector<64x1xf32> to vector<64x512xf32>
    %79 = arith.addf %77, %78 : vector<64x512xf32>
    %80 = vector.broadcast %65 : vector<64x1xf32> to vector<64x512xf32>
    %81 = arith.addf %79, %80 : vector<64x512xf32>
    %82 = arith.negf %81 : vector<64x512xf32>
    %83 = math.exp %82 : vector<64x512xf32>
    %cst_55 = arith.constant 1.000000e+00 : f32
    %84 = vector.broadcast %cst_55 : f32 to vector<64x512xf32>
    %85 = arith.addf %84, %83 : vector<64x512xf32>
    %86 = arith.divf %84, %85 : vector<64x512xf32>
    %87 = arith.mulf %3, %86 : vector<64x512xf32>
    %88 = arith.addf %1, %87 : vector<64x512xf32>
    %c0_56 = arith.constant 0 : index
    %c0_57 = arith.constant 0 : index
    %89 = vector.load %arg16[%c0_56, %c0_57] : memref<64x512xf32, #tpu.memory_space<vmem>>, vector<64x512xf32>
    tpu.vector_store %arg16[%c0_56, %c0_57], %88 {strides = array<i32>} : memref<64x512xf32, #tpu.memory_space<vmem>>, vector<64x512xf32>,
    return
  }
  func.func @transform_0(%arg0: i32) -> (i32, i32) {
    %c0_i32 = arith.constant 0 : i32
    %c0_i32_0 = arith.constant 0 : i32
    %c0_i32_1 = arith.constant 0 : i32
    return %c0_i32, %c0_i32_0 : i32, i32
  }
  func.func @transform_1(%arg0: i32) -> (i32, i32) {
    %c0_i32 = arith.constant 0 : i32
    %c0_i32_0 = arith.constant 0 : i32
    %c0_i32_1 = arith.constant 0 : i32
    return %c0_i32, %c0_i32_0 : i32, i32
  }
  func.func @transform_2(%arg0: i32) -> (i32, i32) {
    %c0_i32 = arith.constant 0 : i32
    %c0_i32_0 = arith.constant 0 : i32
    %c0_i32_1 = arith.constant 0 : i32
    return %c0_i32, %c0_i32_0 : i32, i32
  }
  func.func @transform_3(%arg0: i32) -> (i32, i32) {
    %c0_i32 = arith.constant 0 : i32
    %c0_i32_0 = arith.constant 0 : i32
    %c0_i32_1 = arith.constant 0 : i32
    return %c0_i32, %c0_i32_0 : i32, i32
  }
  func.func @transform_4(%arg0: i32) -> (i32, i32) {
    %c0_i32 = arith.constant 0 : i32
    %c0_i32_0 = arith.constant 0 : i32
    %c0_i32_1 = arith.constant 0 : i32
    return %c0_i32, %c0_i32_0 : i32, i32
  }
  func.func @transform_5(%arg0: i32) -> (i32, i32) {
    %c0_i32 = arith.constant 0 : i32
    %c0_i32_0 = arith.constant 0 : i32
    %c0_i32_1 = arith.constant 0 : i32
    return %c0_i32, %c0_i32_0 : i32, i32
  }
  func.func @transform_6(%arg0: i32) -> (i32, i32) {
    %c0_i32 = arith.constant 0 : i32
    %c0_i32_0 = arith.constant 0 : i32
    %c0_i32_1 = arith.constant 0 : i32
    return %c0_i32, %c0_i32_0 : i32, i32
  }
  func.func @transform_7(%arg0: i32) -> (i32, i32) {
    %c0_i32 = arith.constant 0 : i32
    %c0_i32_0 = arith.constant 0 : i32
    %c0_i32_1 = arith.constant 0 : i32
    return %c0_i32, %c0_i32_0 : i32, i32
  }
  func.func @transform_8(%arg0: i32) -> (i32, i32) {
    %c0_i32 = arith.constant 0 : i32
    %c0_i32_0 = arith.constant 0 : i32
    %c0_i32_1 = arith.constant 0 : i32
    return %c0_i32, %c0_i32_0 : i32, i32
  }
  func.func @transform_9(%arg0: i32) -> (i32, i32) {
    %c0_i32 = arith.constant 0 : i32
    %c0_i32_0 = arith.constant 0 : i32
    %c0_i32_1 = arith.constant 0 : i32
    return %c0_i32, %c0_i32_0 : i32, i32
  }
  func.func @transform_10(%arg0: i32) -> (i32, i32) {
    %c0_i32 = arith.constant 0 : i32
    %c0_i32_0 = arith.constant 0 : i32
    %c0_i32_1 = arith.constant 0 : i32
    return %c0_i32, %c0_i32_0 : i32, i32
  }
  func.func @transform_11(%arg0: i32) -> (i32, i32) {
    %c0_i32 = arith.constant 0 : i32
    %c0_i32_0 = arith.constant 0 : i32
    %c0_i32_1 = arith.constant 0 : i32
    return %c0_i32, %c0_i32_0 : i32, i32
  }
  func.func @transform_12(%arg0: i32) -> (i32, i32) {
    %c0_i32 = arith.constant 0 : i32
    %c0_i32_0 = arith.constant 0 : i32
    %c0_i32_1 = arith.constant 0 : i32
    return %c0_i32, %c0_i32_0 : i32, i32
  }
  func.func @transform_13(%arg0: i32) -> (i32, i32) {
    %c0_i32 = arith.constant 0 : i32
    %c0_i32_0 = arith.constant 0 : i32
    %c0_i32_1 = arith.constant 0 : i32
    return %c0_i32, %c0_i32_0 : i32, i32
  }
  func.func @transform_14(%arg0: i32) -> (i32, i32) {
    %c0_i32 = arith.constant 0 : i32
    %c0_i32_0 = arith.constant 0 : i32
    %c0_i32_1 = arith.constant 0 : i32
    return %c0_i32, %c0_i32_0 : i32, i32
  }
  func.func @transform_15(%arg0: i32) -> (i32, i32) {
    %c0_i32 = arith.constant 0 : i32
    %c0_i32_0 = arith.constant 0 : i32
    %c0_i32_1 = arith.constant 0 : i32
    return %c0_i32, %c0_i32_0 : i32, i32
  }
}

</mosaic_0001>

<llo_original>
// kernel: iaff_forward.1
$region0: #{iaff_forward.1}
  #allocation0 [shape = 'u32[]', space=smem, size = 0x4, offset = 0x4, fixed_abs, tag = 'smem constant byte address 0x4 - core index']
  #allocation1 [shape = 'u32[144,128]{1,0:T(1,128)}', space=vmem, size = 0x12000, scoped, tag = 'internal scratch']
  %s0 = inlined_call_operand.vmem [shape: f32[64,512], index: 0, kind: input, shape index: {}]
  %s1 = inlined_call_operand.vmem [shape: f32[64,512], index: 1, kind: input, shape index: {}]
  %s2 = inlined_call_operand.vmem [shape: f32[512,2], index: 2, kind: input, shape index: {}]
  %s3 = inlined_call_operand.vmem [shape: bf16[16,64], index: 3, kind: input, shape index: {}]
  %s4 = inlined_call_operand.vmem [shape: f32[16,1], index: 4, kind: input, shape index: {}]
  %s5 = inlined_call_operand.vmem [shape: bf16[64,16], index: 5, kind: input, shape index: {}]
  %s6 = inlined_call_operand.vmem [shape: f32[64,1], index: 6, kind: input, shape index: {}]
  %s7 = inlined_call_operand.vmem [shape: bf16[16,64], index: 7, kind: input, shape index: {}]
  %s8 = inlined_call_operand.vmem [shape: f32[16,1], index: 8, kind: input, shape index: {}]
  %s9 = inlined_call_operand.vmem [shape: bf16[64,16], index: 9, kind: input, shape index: {}]
  %s10 = inlined_call_operand.vmem [shape: f32[64,1], index: 10, kind: input, shape index: {}]
  %s11 = inlined_call_operand.vmem [shape: bf16[16,64], index: 11, kind: input, shape index: {}]
  %s12 = inlined_call_operand.vmem [shape: f32[16,1], index: 12, kind: input, shape index: {}]
  %s13 = inlined_call_operand.vmem [shape: bf16[64,16], index: 13, kind: input, shape index: {}]
  %s14 = inlined_call_operand.vmem [shape: f32[64,1], index: 14, kind: input, shape index: {}]
  %s15 = inlined_call_operand.vmem [shape: f32[64,512], index: 15, kind: output, shape index: {}]
  %s16 = sld [smem:[#allocation0]]
  $region70: #{iaff_forward.1} parent=0
    _
  %s18 = ssub.s32 1, %s16
  %s19 = scalar_select 0, %s18, %s16
  // Predicated region
  $region2: #{iaff_forward.1} parent=0 // pred_check
    _
  $region3: #{iaff_forward.1} parent=0 // pred_check_branch
    %21 = sbr.rel (0) target = $region5
  $region4: #{iaff_forward.1} parent=0 // pred_region
    _
  $region5: #{iaff_forward.1} parent=0 // pred_fallthru
    _
  // Predicated region
  $region6: #{iaff_forward.1} parent=0 // pred_check
    _
  $region7: #{iaff_forward.1} parent=0 // pred_check_branch
    %23 = sbr.rel (0) target = $region9
  $region8: #{iaff_forward.1} parent=0 // pred_region
    _
  $region9: #{iaff_forward.1} parent=0 // pred_fallthru
    _
  // Predicated region
  $region10: #{iaff_forward.1} parent=0 // pred_check
    _
  $region11: #{iaff_forward.1} parent=0 // pred_check_branch
    %25 = sbr.rel (0) target = $region13
  $region12: #{iaff_forward.1} parent=0 // pred_region
    _
  $region13: #{iaff_forward.1} parent=0 // pred_fallthru
    _
  // Predicated region
  $region14: #{iaff_forward.1} parent=0 // pred_check
    _
  $region15: #{iaff_forward.1} parent=0 // pred_check_branch
    %27 = sbr.rel (0) target = $region17
  $region16: #{iaff_forward.1} parent=0 // pred_region
    _
  $region17: #{iaff_forward.1} parent=0 // pred_fallthru
    _
  // Predicated region
  $region18: #{iaff_forward.1} parent=0 // pred_check
    _
  $region19: #{iaff_forward.1} parent=0 // pred_check_branch
    %29 = sbr.rel (0) target = $region21
  $region20: #{iaff_forward.1} parent=0 // pred_region
    _
  $region21: #{iaff_forward.1} parent=0 // pred_fallthru
    _
  // Predicated region
  $region22: #{iaff_forward.1} parent=0 // pred_check
    _
  $region23: #{iaff_forward.1} parent=0 // pred_check_branch
    %31 = sbr.rel (0) target = $region25
  $region24: #{iaff_forward.1} parent=0 // pred_region
    _
  $region25: #{iaff_forward.1} parent=0 // pred_fallthru
    _
  // Predicated region
  $region26: #{iaff_forward.1} parent=0 // pred_check
    _
  $region27: #{iaff_forward.1} parent=0 // pred_check_branch
    %33 = sbr.rel (0) target = $region29
  $region28: #{iaff_forward.1} parent=0 // pred_region
    _
  $region29: #{iaff_forward.1} parent=0 // pred_fallthru
    _
  // Predicated region
  $region30: #{iaff_forward.1} parent=0 // pred_check
    _
  $region31: #{iaff_forward.1} parent=0 // pred_check_branch
    %35 = sbr.rel (0) target = $region33
  $region32: #{iaff_forward.1} parent=0 // pred_region
    _
  $region33: #{iaff_forward.1} parent=0 // pred_fallthru
    _
  // Predicated region
  $region34: #{iaff_forward.1} parent=0 // pred_check
    _
  $region35: #{iaff_forward.1} parent=0 // pred_check_branch
    %37 = sbr.rel (0) target = $region37
  $region36: #{iaff_forward.1} parent=0 // pred_region
    _
  $region37: #{iaff_forward.1} parent=0 // pred_fallthru
    _
  // Predicated region
  $region38: #{iaff_forward.1} parent=0 // pred_check
    _
  $region39: #{iaff_forward.1} parent=0 // pred_check_branch
    %39 = sbr.rel (0) target = $region41
  $region40: #{iaff_forward.1} parent=0 // pred_region
    _
  $region41: #{iaff_forward.1} parent=0 // pred_fallthru
    _
  // Predicated region
  $region42: #{iaff_forward.1} parent=0 // pred_check
    _
  $region43: #{iaff_forward.1} parent=0 // pred_check_branch
    %41 = sbr.rel (0) target = $region45
  $region44: #{iaff_forward.1} parent=0 // pred_region
    _
  $region45: #{iaff_forward.1} parent=0 // pred_fallthru
    _
  // Predicated region
  $region46: #{iaff_forward.1} parent=0 // pred_check
    _
  $region47: #{iaff_forward.1} parent=0 // pred_check_branch
    %43 = sbr.rel (0) target = $region49
  $region48: #{iaff_forward.1} parent=0 // pred_region
    _
  $region49: #{iaff_forward.1} parent=0 // pred_fallthru
    _
  // Predicated region
  $region50: #{iaff_forward.1} parent=0 // pred_check
    _
  $region51: #{iaff_forward.1} parent=0 // pred_check_branch
    %45 = sbr.rel (0) target = $region53
  $region52: #{iaff_forward.1} parent=0 // pred_region
    _
  $region53: #{iaff_forward.1} parent=0 // pred_fallthru
    _
  // Predicated region
  $region54: #{iaff_forward.1} parent=0 // pred_check
    _
  $region55: #{iaff_forward.1} parent=0 // pred_check_branch
    %47 = sbr.rel (0) target = $region57
  $region56: #{iaff_forward.1} parent=0 // pred_region
    _
  $region57: #{iaff_forward.1} parent=0 // pred_fallthru
    _
  // Predicated region
  $region58: #{iaff_forward.1} parent=0 // pred_check
    _
  $region59: #{iaff_forward.1} parent=0 // pred_check_branch
    %49 = sbr.rel (0) target = $region61
  $region60: #{iaff_forward.1} parent=0 // pred_region
    _
  $region61: #{iaff_forward.1} parent=0 // pred_fallthru
    _
  %v51 = vld [vmem:[%s0] sm:$0xff]
  %v52 = vld [vmem:[%s0 + $0x8] sm:$0xff]
  %v53 = vld [vmem:[%s0 + $0x10] sm:$0xff]
  %v54 = vld [vmem:[%s0 + $0x18] sm:$0xff]
  %v55 = vld [vmem:[%s0 + $0x20] sm:$0xff]
  %v56 = vld [vmem:[%s0 + $0x28] sm:$0xff]
  %v57 = vld [vmem:[%s0 + $0x30] sm:$0xff]
  %v58 = vld [vmem:[%s0 + $0x38] sm:$0xff]
  %v59 = vld [vmem:[%s0 + $0x40] sm:$0xff]
  %v60 = vld [vmem:[%s0 + $0x48] sm:$0xff]
  %v61 = vld [vmem:[%s0 + $0x50] sm:$0xff]
  %v62 = vld [vmem:[%s0 + $0x58] sm:$0xff]
  %v63 = vld [vmem:[%s0 + $0x60] sm:$0xff]
  %v64 = vld [vmem:[%s0 + $0x68] sm:$0xff]
  %v65 = vld [vmem:[%s0 + $0x70] sm:$0xff]
  %v66 = vld [vmem:[%s0 + $0x78] sm:$0xff]
  %v67 = vld [vmem:[%s0 + $0x80] sm:$0xff]
  %v68 = vld [vmem:[%s0 + $0x88] sm:$0xff]
  %v69 = vld [vmem:[%s0 + $0x90] sm:$0xff]
  %v70 = vld [vmem:[%s0 + $0x98] sm:$0xff]
  %v71 = vld [vmem:[%s0 + $0xa0] sm:$0xff]
  %v72 = vld [vmem:[%s0 + $0xa8] sm:$0xff]
  %v73 = vld [vmem:[%s0 + $0xb0] sm:$0xff]
  %v74 = vld [vmem:[%s0 + $0xb8] sm:$0xff]
  %v75 = vld [vmem:[%s0 + $0xc0] sm:$0xff]
  %v76 = vld [vmem:[%s0 + $0xc8] sm:$0xff]
  %v77 = vld [vmem:[%s0 + $0xd0] sm:$0xff]
  %v78 = vld [vmem:[%s0 + $0xd8] sm:$0xff]
  %v79 = vld [vmem:[%s0 + $0xe0] sm:$0xff]
  %v80 = vld [vmem:[%s0 + $0xe8] sm:$0xff]
  %v81 = vld [vmem:[%s0 + $0xf0] sm:$0xff]
  %v82 = vld [vmem:[%s0 + $0xf8] sm:$0xff]
  %v83 = vld [vmem:[%s1] sm:$0xff]
  %v84 = vld [vmem:[%s1 + $0x8] sm:$0xff]
  %v85 = vld [vmem:[%s1 + $0x10] sm:$0xff]
  %v86 = vld [vmem:[%s1 + $0x18] sm:$0xff]
  %v87 = vld [vmem:[%s1 + $0x20] sm:$0xff]
  %v88 = vld [vmem:[%s1 + $0x28] sm:$0xff]
  %v89 = vld [vmem:[%s1 + $0x30] sm:$0xff]
  %v90 = vld [vmem:[%s1 + $0x38] sm:$0xff]
  %v91 = vld [vmem:[%s1 + $0x40] sm:$0xff]
  %v92 = vld [vmem:[%s1 + $0x48] sm:$0xff]
  %v93 = vld [vmem:[%s1 + $0x50] sm:$0xff]
  %v94 = vld [vmem:[%s1 + $0x58] sm:$0xff]
  %v95 = vld [vmem:[%s1 + $0x60] sm:$0xff]
  %v96 = vld [vmem:[%s1 + $0x68] sm:$0xff]
  %v97 = vld [vmem:[%s1 + $0x70] sm:$0xff]
  %v98 = vld [vmem:[%s1 + $0x78] sm:$0xff]
  %v99 = vld [vmem:[%s1 + $0x80] sm:$0xff]
  %v100 = vld [vmem:[%s1 + $0x88] sm:$0xff]
  %v101 = vld [vmem:[%s1 + $0x90] sm:$0xff]
  %v102 = vld [vmem:[%s1 + $0x98] sm:$0xff]
  %v103 = vld [vmem:[%s1 + $0xa0] sm:$0xff]
  %v104 = vld [vmem:[%s1 + $0xa8] sm:$0xff]
  %v105 = vld [vmem:[%s1 + $0xb0] sm:$0xff]
  %v106 = vld [vmem:[%s1 + $0xb8] sm:$0xff]
  %v107 = vld [vmem:[%s1 + $0xc0] sm:$0xff]
  %v108 = vld [vmem:[%s1 + $0xc8] sm:$0xff]
  %v109 = vld [vmem:[%s1 + $0xd0] sm:$0xff]
  %v110 = vld [vmem:[%s1 + $0xd8] sm:$0xff]
  %v111 = vld [vmem:[%s1 + $0xe0] sm:$0xff]
  %v112 = vld [vmem:[%s1 + $0xe8] sm:$0xff]
  %v113 = vld [vmem:[%s1 + $0xf0] sm:$0xff]
  %v114 = vld [vmem:[%s1 + $0xf8] sm:$0xff]
  %v115 = vld [vmem:[%s2] sm:$0xff]
  %v116 = vld [vmem:[%s2 + $0x8] sm:$0xff]
  %v117 = vld [vmem:[%s2 + $0x10] sm:$0xff]
  %v118 = vld [vmem:[%s2 + $0x18] sm:$0xff]
  %v119 = vld [vmem:[%s2 + $0x20] sm:$0xff]
  %v120 = vld [vmem:[%s2 + $0x28] sm:$0xff]
  %v121 = vld [vmem:[%s2 + $0x30] sm:$0xff]
  %v122 = vld [vmem:[%s2 + $0x38] sm:$0xff]
  %v123 = vld [vmem:[%s2 + $0x40] sm:$0xff]
  %v124 = vld [vmem:[%s2 + $0x48] sm:$0xff]
  %v125 = vld [vmem:[%s2 + $0x50] sm:$0xff]
  %v126 = vld [vmem:[%s2 + $0x58] sm:$0xff]
  %v127 = vld [vmem:[%s2 + $0x60] sm:$0xff]
  %v128 = vld [vmem:[%s2 + $0x68] sm:$0xff]
  %v129 = vld [vmem:[%s2 + $0x70] sm:$0xff]
  %v130 = vld [vmem:[%s2 + $0x78] sm:$0xff]
  %v131 = vld [vmem:[%s2 + $0x80] sm:$0xff]
  %v132 = vld [vmem:[%s2 + $0x88] sm:$0xff]
  %v133 = vld [vmem:[%s2 + $0x90] sm:$0xff]
  %v134 = vld [vmem:[%s2 + $0x98] sm:$0xff]
  %v135 = vld [vmem:[%s2 + $0xa0] sm:$0xff]
  %v136 = vld [vmem:[%s2 + $0xa8] sm:$0xff]
  %v137 = vld [vmem:[%s2 + $0xb0] sm:$0xff]
  %v138 = vld [vmem:[%s2 + $0xb8] sm:$0xff]
  %v139 = vld [vmem:[%s2 + $0xc0] sm:$0xff]
  %v140 = vld [vmem:[%s2 + $0xc8] sm:$0xff]
  %v141 = vld [vmem:[%s2 + $0xd0] sm:$0xff]
  %v142 = vld [vmem:[%s2 + $0xd8] sm:$0xff]
  %v143 = vld [vmem:[%s2 + $0xe0] sm:$0xff]
  %v144 = vld [vmem:[%s2 + $0xe8] sm:$0xff]
  %v145 = vld [vmem:[%s2 + $0xf0] sm:$0xff]
  %v146 = vld [vmem:[%s2 + $0xf8] sm:$0xff]
  %v147 = vld [vmem:[%s2 + $0x100] sm:$0xff]
  %v148 = vld [vmem:[%s2 + $0x108] sm:$0xff]
  %v149 = vld [vmem:[%s2 + $0x110] sm:$0xff]
  %v150 = vld [vmem:[%s2 + $0x118] sm:$0xff]
  %v151 = vld [vmem:[%s2 + $0x120] sm:$0xff]
  %v152 = vld [vmem:[%s2 + $0x128] sm:$0xff]
  %v153 = vld [vmem:[%s2 + $0x130] sm:$0xff]
  %v154 = vld [vmem:[%s2 + $0x138] sm:$0xff]
  %v155 = vld [vmem:[%s2 + $0x140] sm:$0xff]
  %v156 = vld [vmem:[%s2 + $0x148] sm:$0xff]
  %v157 = vld [vmem:[%s2 + $0x150] sm:$0xff]
  %v158 = vld [vmem:[%s2 + $0x158] sm:$0xff]
  %v159 = vld [vmem:[%s2 + $0x160] sm:$0xff]
  %v160 = vld [vmem:[%s2 + $0x168] sm:$0xff]
  %v161 = vld [vmem:[%s2 + $0x170] sm:$0xff]
  %v162 = vld [vmem:[%s2 + $0x178] sm:$0xff]
  %v163 = vld [vmem:[%s2 + $0x180] sm:$0xff]
  %v164 = vld [vmem:[%s2 + $0x188] sm:$0xff]
  %v165 = vld [vmem:[%s2 + $0x190] sm:$0xff]
  %v166 = vld [vmem:[%s2 + $0x198] sm:$0xff]
  %v167 = vld [vmem:[%s2 + $0x1a0] sm:$0xff]
  %v168 = vld [vmem:[%s2 + $0x1a8] sm:$0xff]
  %v169 = vld [vmem:[%s2 + $0x1b0] sm:$0xff]
  %v170 = vld [vmem:[%s2 + $0x1b8] sm:$0xff]
  %v171 = vld [vmem:[%s2 + $0x1c0] sm:$0xff]
  %v172 = vld [vmem:[%s2 + $0x1c8] sm:$0xff]
  %v173 = vld [vmem:[%s2 + $0x1d0] sm:$0xff]
  %v174 = vld [vmem:[%s2 + $0x1d8] sm:$0xff]
  %v175 = vld [vmem:[%s2 + $0x1e0] sm:$0xff]
  %v176 = vld [vmem:[%s2 + $0x1e8] sm:$0xff]
  %v177 = vld [vmem:[%s2 + $0x1f0] sm:$0xff]
  %v178 = vld [vmem:[%s2 + $0x1f8] sm:$0xff]
  %v179 = vsub.f32 %v51, %v83
  %v180 = vsub.f32 %v52, %v84
  %v181 = vsub.f32 %v53, %v85
  %v182 = vsub.f32 %v54, %v86
  %v183 = vsub.f32 %v55, %v87
  %v184 = vsub.f32 %v56, %v88
  %v185 = vsub.f32 %v57, %v89
  %v186 = vsub.f32 %v58, %v90
  %v187 = vsub.f32 %v59, %v91
  %v188 = vsub.f32 %v60, %v92
  %v189 = vsub.f32 %v61, %v93
  %v190 = vsub.f32 %v62, %v94
  %v191 = vsub.f32 %v63, %v95
  %v192 = vsub.f32 %v64, %v96
  %v193 = vsub.f32 %v65, %v97
  %v194 = vsub.f32 %v66, %v98
  %v195 = vsub.f32 %v67, %v99
  %v196 = vsub.f32 %v68, %v100
  %v197 = vsub.f32 %v69, %v101
  %v198 = vsub.f32 %v70, %v102
  %v199 = vsub.f32 %v71, %v103
  %v200 = vsub.f32 %v72, %v104
  %v201 = vsub.f32 %v73, %v105
  %v202 = vsub.f32 %v74, %v106
  %v203 = vsub.f32 %v75, %v107
  %v204 = vsub.f32 %v76, %v108
  %v205 = vsub.f32 %v77, %v109
  %v206 = vsub.f32 %v78, %v110
  %v207 = vsub.f32 %v79, %v111
  %v208 = vsub.f32 %v80, %v112
  %v209 = vsub.f32 %v81, %v113
  %v210 = vsub.f32 %v82, %v114
  %v211 = vadd.f32 %v51, %v83
  %v212 = vadd.f32 %v52, %v84
  %v213 = vadd.f32 %v53, %v85
  %v214 = vadd.f32 %v54, %v86
  %v215 = vadd.f32 %v55, %v87
  %v216 = vadd.f32 %v56, %v88
  %v217 = vadd.f32 %v57, %v89
  %v218 = vadd.f32 %v58, %v90
  %v219 = vadd.f32 %v59, %v91
  %v220 = vadd.f32 %v60, %v92
  %v221 = vadd.f32 %v61, %v93
  %v222 = vadd.f32 %v62, %v94
  %v223 = vadd.f32 %v63, %v95
  %v224 = vadd.f32 %v64, %v96
  %v225 = vadd.f32 %v65, %v97
  %v226 = vadd.f32 %v66, %v98
  %v227 = vadd.f32 %v67, %v99
  %v228 = vadd.f32 %v68, %v100
  %v229 = vadd.f32 %v69, %v101
  %v230 = vadd.f32 %v70, %v102
  %v231 = vadd.f32 %v71, %v103
  %v232 = vadd.f32 %v72, %v104
  %v233 = vadd.f32 %v73, %v105
  %v234 = vadd.f32 %v74, %v106
  %v235 = vadd.f32 %v75, %v107
  %v236 = vadd.f32 %v76, %v108
  %v237 = vadd.f32 %v77, %v109
  %v238 = vadd.f32 %v78, %v110
  %v239 = vadd.f32 %v79, %v111
  %v240 = vadd.f32 %v80, %v112
  %v241 = vadd.f32 %v81, %v113
  %v242 = vadd.f32 %v82, %v114
  %243 = vmatprep.subr.mxu0 0.0
  %244 = vmatpush1.msra.mxu0 %v130
  %245 = vmatprep.subr.mxu0 0.0
  %246 = vmatpush1.msra.mxu0 %v129
  %247 = vmatprep.subr.mxu0 0.0
  %248 = vmatpush1.msra.mxu0 %v128
  %249 = vmatprep.subr.mxu0 0.0
  %250 = vmatpush1.msra.mxu0 %v127
  %251 = vmatprep.subr.mxu0 0.0
  %252 = vmatpush1.msra.mxu0 %v126
  %253 = vmatprep.subr.mxu0 0.0
  %254 = vmatpush1.msra.mxu0 %v125
  %255 = vmatprep.subr.mxu0 0.0
  %256 = vmatpush1.msra.mxu0 %v124
  %257 = vmatprep.subr.mxu0 0.0
  %258 = vmatpush1.msra.mxu0 %v123
  %259 = vmatprep.subr.mxu0 0.0
  %260 = vmatpush1.msra.mxu0 %v122
  %261 = vmatprep.subr.mxu0 0.0
  %262 = vmatpush1.msra.mxu0 %v121
  %263 = vmatprep.subr.mxu0 0.0
  %264 = vmatpush1.msra.mxu0 %v120
  %265 = vmatprep.subr.mxu0 0.0
  %266 = vmatpush1.msra.mxu0 %v119
  %267 = vmatprep.subr.mxu0 0.0
  %268 = vmatpush1.msra.mxu0 %v118
  %269 = vmatprep.subr.mxu0 0.0
  %270 = vmatpush1.msra.mxu0 %v117
  %271 = vmatprep.subr.mxu0 0.0
  %272 = vmatpush1.msra.mxu0 %v116
  %273 = vmatprep.subr.mxu0 0.0
  %274 = vmatpush1.msra.mxu0 %v115
  %275 = vmatprep.subr.mxu0 0.0
  %276 = vmatpush2.msra.mxu0 %v146
  %277 = vmatprep.subr.mxu0 0.0
  %278 = vmatpush2.msra.mxu0 %v145
  %279 = vmatprep.subr.mxu0 0.0
  %280 = vmatpush2.msra.mxu0 %v144
  %281 = vmatprep.subr.mxu0 0.0
  %282 = vmatpush2.msra.mxu0 %v143
  %283 = vmatprep.subr.mxu0 0.0
  %284 = vmatpush2.msra.mxu0 %v142
  %285 = vmatprep.subr.mxu0 0.0
  %286 = vmatpush2.msra.mxu0 %v141
  %287 = vmatprep.subr.mxu0 0.0
  %288 = vmatpush2.msra.mxu0 %v140
  %289 = vmatprep.subr.mxu0 0.0
  %290 = vmatpush2.msra.mxu0 %v139
  %291 = vmatprep.subr.mxu0 0.0
  %292 = vmatpush2.msra.mxu0 %v138
  %293 = vmatprep.subr.mxu0 0.0
  %294 = vmatpush2.msra.mxu0 %v137
  %295 = vmatprep.subr.mxu0 0.0
  %296 = vmatpush2.msra.mxu0 %v136
  %297 = vmatprep.subr.mxu0 0.0
  %298 = vmatpush2.msra.mxu0 %v135
  %299 = vmatprep.subr.mxu0 0.0
  %300 = vmatpush2.msra.mxu0 %v134
  %301 = vmatprep.subr.mxu0 0.0
  %302 = vmatpush2.msra.mxu0 %v133
  %303 = vmatprep.subr.mxu0 0.0
  %304 = vmatpush2.msra.mxu0 %v132
  %305 = vmatprep.subr.mxu0 0.0
  %306 = vmatpush2.msra.mxu0 %v131
  %307 = vmatprep.mubr.f32.mxu0 %v212
  %308 = vmatmul.mubr.f32.gmra.mxu0 %v211
  %v309 = vpop.f32.mrf.mxu0
  %v310 = vadd.f32 0.0, %v309
  %v311 = vpop.f32.mrf.mxu0
  %312 = vmatprep.mubr.f32.mxu0 %v216
  %313 = vmatmul.mubr.f32.gmra.mxu0 %v215
  %v314 = vpop.f32.mrf.mxu0
  %v315 = vadd.f32 0.0, %v314
  %v316 = vpop.f32.mrf.mxu0
  %317 = vmatprep.mubr.f32.mxu0 %v220
  %318 = vmatmul.mubr.f32.gmra.mxu0 %v219
  %v319 = vpop.f32.mrf.mxu0
  %v320 = vadd.f32 0.0, %v319
  %v321 = vpop.f32.mrf.mxu0
  %322 = vmatprep.mubr.f32.mxu0 %v224
  %323 = vmatmul.mubr.f32.gmra.mxu0 %v223
  %v324 = vpop.f32.mrf.mxu0
  %v325 = vadd.f32 0.0, %v324
  %v326 = vpop.f32.mrf.mxu0
  %327 = vmatprep.mubr.f32.mxu0 %v228
  %328 = vmatmul.mubr.f32.gmra.mxu0 %v227
  %v329 = vpop.f32.mrf.mxu0
  %v330 = vadd.f32 0.0, %v329
  %v331 = vpop.f32.mrf.mxu0
  %332 = vmatprep.mubr.f32.mxu0 %v232
  %333 = vmatmul.mubr.f32.gmra.mxu0 %v231
  %v334 = vpop.f32.mrf.mxu0
  %v335 = vadd.f32 0.0, %v334
  %v336 = vpop.f32.mrf.mxu0
  %337 = vmatprep.mubr.f32.mxu0 %v236
  %338 = vmatmul.mubr.f32.gmra.mxu0 %v235
  %v339 = vpop.f32.mrf.mxu0
  %v340 = vadd.f32 0.0, %v339
  %v341 = vpop.f32.mrf.mxu0
  %342 = vmatprep.mubr.f32.mxu0 %v240
  %343 = vmatmul.mubr.f32.gmra.mxu0 %v239
  %v344 = vpop.f32.mrf.mxu0
  %v345 = vadd.f32 0.0, %v344
  %v346 = vpop.f32.mrf.mxu0
  %347 = vdwg.mxu0
  %348 = vmatprep.subr.mxu0 0.0
  %349 = vmatpush1.msra.mxu0 %v162
  %350 = vmatprep.subr.mxu0 0.0
  %351 = vmatpush1.msra.mxu0 %v161
  %352 = vmatprep.subr.mxu0 0.0
  %353 = vmatpush1.msra.mxu0 %v160
  %354 = vmatprep.subr.mxu0 0.0
  %355 = vmatpush1.msra.mxu0 %v159
  %356 = vmatprep.subr.mxu0 0.0
  %357 = vmatpush1.msra.mxu0 %v158
  %358 = vmatprep.subr.mxu0 0.0
  %359 = vmatpush1.msra.mxu0 %v157
  %360 = vmatprep.subr.mxu0 0.0
  %361 = vmatpush1.msra.mxu0 %v156
  %362 = vmatprep.subr.mxu0 0.0
  %363 = vmatpush1.msra.mxu0 %v155
  %364 = vmatprep.subr.mxu0 0.0
  %365 = vmatpush1.msra.mxu0 %v154
  %366 = vmatprep.subr.mxu0 0.0
  %367 = vmatpush1.msra.mxu0 %v153
  %368 = vmatprep.subr.mxu0 0.0
  %369 = vmatpush1.msra.mxu0 %v152
  %370 = vmatprep.subr.mxu0 0.0
  %371 = vmatpush1.msra.mxu0 %v151
  %372 = vmatprep.subr.mxu0 0.0
  %373 = vmatpush1.msra.mxu0 %v150
  %374 = vmatprep.subr.mxu0 0.0
  %375 = vmatpush1.msra.mxu0 %v149
  %376 = vmatprep.subr.mxu0 0.0
  %377 = vmatpush1.msra.mxu0 %v148
  %378 = vmatprep.subr.mxu0 0.0
  %379 = vmatpush1.msra.mxu0 %v147
  %380 = vmatprep.subr.mxu0 0.0
  %381 = vmatpush2.msra.mxu0 %v178
  %382 = vmatprep.subr.mxu0 0.0
  %383 = vmatpush2.msra.mxu0 %v177
  %384 = vmatprep.subr.mxu0 0.0
  %385 = vmatpush2.msra.mxu0 %v176
  %386 = vmatprep.subr.mxu0 0.0
  %387 = vmatpush2.msra.mxu0 %v175
  %388 = vmatprep.subr.mxu0 0.0
  %389 = vmatpush2.msra.mxu0 %v174
  %390 = vmatprep.subr.mxu0 0.0
  %391 = vmatpush2.msra.mxu0 %v173
  %392 = vmatprep.subr.mxu0 0.0
  %393 = vmatpush2.msra.mxu0 %v172
  %394 = vmatprep.subr.mxu0 0.0
  %395 = vmatpush2.msra.mxu0 %v171
  %396 = vmatprep.subr.mxu0 0.0
  %397 = vmatpush2.msra.mxu0 %v170
  %398 = vmatprep.subr.mxu0 0.0
  %399 = vmatpush2.msra.mxu0 %v169
  %400 = vmatprep.subr.mxu0 0.0
  %401 = vmatpush2.msra.mxu0 %v168
  %402 = vmatprep.subr.mxu0 0.0
  %403 = vmatpush2.msra.mxu0 %v167
  %404 = vmatprep.subr.mxu0 0.0
  %405 = vmatpush2.msra.mxu0 %v166
  %406 = vmatprep.subr.mxu0 0.0
  %407 = vmatpush2.msra.mxu0 %v165
  %408 = vmatprep.subr.mxu0 0.0
  %409 = vmatpush2.msra.mxu0 %v164
  %410 = vmatprep.subr.mxu0 0.0
  %411 = vmatpush2.msra.mxu0 %v163
  %412 = vmatprep.mubr.f32.mxu0 %v214
  %413 = vmatmul.mubr.f32.gmra.mxu0 %v213
  %v414 = vpop.f32.mrf.mxu0
  %v415 = vadd.f32 %v310, %v414
  %v416 = vpop.f32.mrf.mxu0
  %417 = vmatprep.mubr.f32.mxu0 %v218
  %418 = vmatmul.mubr.f32.gmra.mxu0 %v217
  %v419 = vpop.f32.mrf.mxu0
  %v420 = vadd.f32 %v315, %v419
  %v421 = vpop.f32.mrf.mxu0
  %422 = vmatprep.mubr.f32.mxu0 %v222
  %423 = vmatmul.mubr.f32.gmra.mxu0 %v221
  %v424 = vpop.f32.mrf.mxu0
  %v425 = vadd.f32 %v320, %v424
  %v426 = vpop.f32.mrf.mxu0
  %427 = vmatprep.mubr.f32.mxu0 %v226
  %428 = vmatmul.mubr.f32.gmra.mxu0 %v225
  %v429 = vpop.f32.mrf.mxu0
  %v430 = vadd.f32 %v325, %v429
  %v431 = vpop.f32.mrf.mxu0
  %432 = vmatprep.mubr.f32.mxu0 %v230
  %433 = vmatmul.mubr.f32.gmra.mxu0 %v229
  %v434 = vpop.f32.mrf.mxu0
  %v435 = vadd.f32 %v330, %v434
  %v436 = vpop.f32.mrf.mxu0
  %437 = vmatprep.mubr.f32.mxu0 %v234
  %438 = vmatmul.mubr.f32.gmra.mxu0 %v233
  %v439 = vpop.f32.mrf.mxu0
  %v440 = vadd.f32 %v335, %v439
  %v441 = vpop.f32.mrf.mxu0
  %442 = vmatprep.mubr.f32.mxu0 %v238
  %443 = vmatmul.mubr.f32.gmra.mxu0 %v237
  %v444 = vpop.f32.mrf.mxu0
  %v445 = vadd.f32 %v340, %v444
  %v446 = vpop.f32.mrf.mxu0
  %447 = vmatprep.mubr.f32.mxu0 %v242
  %448 = vmatmul.mubr.f32.gmra.mxu0 %v241
  %v449 = vpop.f32.mrf.mxu0
  %v450 = vadd.f32 %v345, %v449
  %v451 = vpop.f32.mrf.mxu0
  %452 = vdwg.mxu0
  %v453 = vld [vmem:[%s7] sm:$0xf]
  %v454 = vld [vmem:[%s7 + $0x4] sm:$0xf]
  %v455 = vld [vmem:[%s8] sm:$0xff]
  %v456 = vld [vmem:[%s8 + $0x8] sm:$0xff]
  %v457 = vld [vmem:[%s9] sm:$0xf]
  %v458 = vld [vmem:[%s9 + $0x4] sm:$0xf]
  %v459 = vld [vmem:[%s9 + $0x8] sm:$0xf]
  %v460 = vld [vmem:[%s9 + $0xc] sm:$0xf]
  %v461 = vld [vmem:[%s9 + $0x10] sm:$0xf]
  %v462 = vld [vmem:[%s9 + $0x14] sm:$0xf]
  %v463 = vld [vmem:[%s9 + $0x18] sm:$0xf]
  %v464 = vld [vmem:[%s9 + $0x1c] sm:$0xf]
  %v465 = vld [vmem:[%s10] sm:$0xff]
  %v466 = vld [vmem:[%s10 + $0x8] sm:$0xff]
  %v467 = vld [vmem:[%s10 + $0x10] sm:$0xff]
  %v468 = vld [vmem:[%s10 + $0x18] sm:$0xff]
  %v469 = vld [vmem:[%s10 + $0x20] sm:$0xff]
  %v470 = vld [vmem:[%s10 + $0x28] sm:$0xff]
  %v471 = vld [vmem:[%s10 + $0x30] sm:$0xff]
  %v472 = vld [vmem:[%s10 + $0x38] sm:$0xff]
  %v473 = vpack.c.bf16 %v420, %v415
  %v474 = vpack.c.bf16 %v430, %v425
  %v475 = vpack.c.bf16 %v440, %v435
  %v476 = vpack.c.bf16 %v450, %v445
  %478 = vset.pattern.permute.xlu0 0
  %479 = vperm.xlu0 %478, %v455
  %v480 = vpop.permute.xlu0 %479
  %483 = vset.pattern.permute.xlu0 0
  %484 = vperm.xlu0 %483, %v456
  %v485 = vpop.permute.xlu0 %484
  %v489 = vunpack.c.l.b16 %v453
  %v490 = vunpack.c.l.b16 %v454
  %v491 = vpack.c.b16 %v490, %v489
  %vm492 = vcmask 523264
  %v494 = vsel %vm492, %v491, 0
  %496 = vmatprep.subr.bf16.mxu0 0
  %497 = vmatpush1.bf16.msra.mxu0 0
  %498 = vmatprep.subr.bf16.mxu0 0
  %499 = vmatpush1.bf16.msra.mxu0 0
  %500 = vmatprep.subr.bf16.mxu0 0
  %501 = vmatpush1.bf16.msra.mxu0 0
  %502 = vmatprep.subr.bf16.mxu0 0
  %503 = vmatpush1.bf16.msra.mxu0 0
  %504 = vmatprep.subr.bf16.mxu0 0
  %505 = vmatpush1.bf16.msra.mxu0 %v476
  %506 = vmatprep.subr.bf16.mxu0 0
  %507 = vmatpush1.bf16.msra.mxu0 %v475
  %508 = vmatprep.subr.bf16.mxu0 0
  %509 = vmatpush1.bf16.msra.mxu0 %v474
  %510 = vmatprep.subr.bf16.mxu0 0
  %511 = vmatpush1.bf16.msra.mxu0 %v473
  %512 = vmatprep.subr.bf16.mxu0 0
  %513 = vmatpush2.bf16.msra.mxu0 0
  %514 = vmatprep.subr.bf16.mxu0 0
  %515 = vmatpush2.bf16.msra.mxu0 0
  %516 = vmatprep.subr.bf16.mxu0 0
  %517 = vmatpush2.bf16.msra.mxu0 0
  %518 = vmatprep.subr.bf16.mxu0 0
  %519 = vmatpush2.bf16.msra.mxu0 0
  %520 = vmatprep.subr.bf16.mxu0 0
  %521 = vmatpush2.bf16.msra.mxu0 0
  %522 = vmatprep.subr.bf16.mxu0 0
  %523 = vmatpush2.bf16.msra.mxu0 0
  %524 = vmatprep.subr.bf16.mxu0 0
  %525 = vmatpush2.bf16.msra.mxu0 0
  %526 = vmatprep.subr.bf16.mxu0 0
  %527 = vmatpush2.bf16.msra.mxu0 0
  %528 = vmatprep.mubr.bf16.mxu0 0
  %529 = vmatmul.mubr.bf16.gmra.mxu0 %v494
  %v530 = vpop.f32.mrf.mxu0
  %v531 = vadd.f32 %v480, %v530
  %v532 = vpop.f32.mrf.mxu0
  %v533 = vpop.f32.mrf.mxu0
  %v534 = vadd.f32 %v485, %v533
  %v535 = vpop.f32.mrf.mxu0
  %536 = vdwg.mxu0
  %v537 = vmax.f32 %v531, 0.0
  %v538 = vmax.f32 %v534, 0.0
  %v539 = vpack.c.bf16 %v538, %v537
  %541 = vset.pattern.permute.xlu0 0
  %542 = vperm.xlu0 %541, %v465
  %v543 = vpop.permute.xlu0 %542
  %546 = vset.pattern.permute.xlu0 0
  %547 = vperm.xlu0 %546, %v466
  %v548 = vpop.permute.xlu0 %547
  %551 = vset.pattern.permute.xlu0 0
  %552 = vperm.xlu0 %551, %v467
  %v553 = vpop.permute.xlu0 %552
  %556 = vset.pattern.permute.xlu0 0
  %557 = vperm.xlu0 %556, %v468
  %v558 = vpop.permute.xlu0 %557
  %561 = vset.pattern.permute.xlu0 0
  %562 = vperm.xlu0 %561, %v469
  %v563 = vpop.permute.xlu0 %562
  %566 = vset.pattern.permute.xlu0 0
  %567 = vperm.xlu0 %566, %v470
  %v568 = vpop.permute.xlu0 %567
  %571 = vset.pattern.permute.xlu0 0
  %572 = vperm.xlu0 %571, %v471
  %v573 = vpop.permute.xlu0 %572
  %576 = vset.pattern.permute.xlu0 0
  %577 = vperm.xlu0 %576, %v472
  %v578 = vpop.permute.xlu0 %577
  %v588 = vunpack.c.l.b16 %v457
  %v589 = vunpack.c.l.b16 %v458
  %v590 = vunpack.c.l.b16 %v459
  %v591 = vunpack.c.l.b16 %v460
  %v592 = vunpack.c.l.b16 %v461
  %v593 = vunpack.c.l.b16 %v462
  %v594 = vunpack.c.l.b16 %v463
  %v595 = vunpack.c.l.b16 %v464
  %v596 = vpack.c.b16 %v589, %v588
  %v597 = vpack.c.b16 %v591, %v590
  %v598 = vpack.c.b16 %v593, %v592
  %v599 = vpack.c.b16 %v595, %v594
  %vm600 = vcmask 130048
  %v602 = vsel %vm600, %v596, 0
  %v605 = vsel %vm600, %v597, 0
  %v608 = vsel %vm600, %v598, 0
  %v611 = vsel %vm600, %v599, 0
  %613 = vmatprep.subr.bf16.mxu0 0
  %614 = vmatpush1.bf16.msra.mxu0 0
  %615 = vmatprep.subr.bf16.mxu0 0
  %616 = vmatpush1.bf16.msra.mxu0 0
  %617 = vmatprep.subr.bf16.mxu0 0
  %618 = vmatpush1.bf16.msra.mxu0 0
  %619 = vmatprep.subr.bf16.mxu0 0
  %620 = vmatpush1.bf16.msra.mxu0 0
  %621 = vmatprep.subr.bf16.mxu0 0
  %622 = vmatpush1.bf16.msra.mxu0 0
  %623 = vmatprep.subr.bf16.mxu0 0
  %624 = vmatpush1.bf16.msra.mxu0 0
  %625 = vmatprep.subr.bf16.mxu0 0
  %626 = vmatpush1.bf16.msra.mxu0 0
  %627 = vmatprep.subr.bf16.mxu0 0
  %628 = vmatpush1.bf16.msra.mxu0 %v539
  %629 = vmatprep.subr.bf16.mxu0 0
  %630 = vmatpush2.bf16.msra.mxu0 0
  %631 = vmatprep.subr.bf16.mxu0 0
  %632 = vmatpush2.bf16.msra.mxu0 0
  %633 = vmatprep.subr.bf16.mxu0 0
  %634 = vmatpush2.bf16.msra.mxu0 0
  %635 = vmatprep.subr.bf16.mxu0 0
  %636 = vmatpush2.bf16.msra.mxu0 0
  %637 = vmatprep.subr.bf16.mxu0 0
  %638 = vmatpush2.bf16.msra.mxu0 0
  %639 = vmatprep.subr.bf16.mxu0 0
  %640 = vmatpush2.bf16.msra.mxu0 0
  %641 = vmatprep.subr.bf16.mxu0 0
  %642 = vmatpush2.bf16.msra.mxu0 0
  %643 = vmatprep.subr.bf16.mxu0 0
  %644 = vmatpush2.bf16.msra.mxu0 0
  %645 = vmatprep.mubr.bf16.mxu0 0
  %646 = vmatmul.mubr.bf16.gmra.mxu0 %v602
  %v647 = vpop.f32.mrf.mxu0
  %v648 = vadd.f32 %v543, %v647
  %v649 = vpop.f32.mrf.mxu0
  %v650 = vpop.f32.mrf.mxu0
  %v651 = vadd.f32 %v548, %v650
  %v652 = vpop.f32.mrf.mxu0
  %653 = vmatprep.mubr.bf16.mxu0 0
  %654 = vmatmul.mubr.bf16.gmra.mxu0 %v605
  %v655 = vpop.f32.mrf.mxu0
  %v656 = vadd.f32 %v553, %v655
  %v657 = vpop.f32.mrf.mxu0
  %v658 = vpop.f32.mrf.mxu0
  %v659 = vadd.f32 %v558, %v658
  %v660 = vpop.f32.mrf.mxu0
  %661 = vmatprep.mubr.bf16.mxu0 0
  %662 = vmatmul.mubr.bf16.gmra.mxu0 %v608
  %v663 = vpop.f32.mrf.mxu0
  %v664 = vadd.f32 %v563, %v663
  %v665 = vpop.f32.mrf.mxu0
  %v666 = vpop.f32.mrf.mxu0
  %v667 = vadd.f32 %v568, %v666
  %v668 = vpop.f32.mrf.mxu0
  %669 = vmatprep.mubr.bf16.mxu0 0
  %670 = vmatmul.mubr.bf16.gmra.mxu0 %v611
  %v671 = vpop.f32.mrf.mxu0
  %v672 = vadd.f32 %v573, %v671
  %v673 = vpop.f32.mrf.mxu0
  %v674 = vpop.f32.mrf.mxu0
  %v675 = vadd.f32 %v578, %v674
  %v676 = vpop.f32.mrf.mxu0
  %677 = vdwg.mxu0
  %vm678 = vcmask 15360
  %v679 = vsel %vm678, %v648, 0.0
  %680 = vadd.xlane.f32.xlu0 %v679
  %v681 = vpop.xlane.xlu0 %680
  %v682 = vsel %vm678, %v651, 0.0
  %683 = vadd.xlane.f32.xlu0 %v682
  %v684 = vpop.xlane.xlu0 %683
  %v685 = vsel %vm678, %v656, 0.0
  %686 = vadd.xlane.f32.xlu0 %v685
  %v687 = vpop.xlane.xlu0 %686
  %v688 = vsel %vm678, %v659, 0.0
  %689 = vadd.xlane.f32.xlu0 %v688
  %v690 = vpop.xlane.xlu0 %689
  %v691 = vsel %vm678, %v664, 0.0
  %692 = vadd.xlane.f32.xlu0 %v691
  %v693 = vpop.xlane.xlu0 %692
  %v694 = vsel %vm678, %v667, 0.0
  %695 = vadd.xlane.f32.xlu0 %v694
  %v696 = vpop.xlane.xlu0 %695
  %v697 = vsel %vm678, %v672, 0.0
  %698 = vadd.xlane.f32.xlu0 %v697
  %v699 = vpop.xlane.xlu0 %698
  %v700 = vsel %vm678, %v675, 0.0
  %701 = vadd.xlane.f32.xlu0 %v700
  %v702 = vpop.xlane.xlu0 %701
  %v703 = vrcp.pop 2.0
  %v704 = vmul.f32 %v681, %v703
  %v705 = vmul.f32 %v684, %v703
  %v706 = vmul.f32 %v687, %v703
  %v707 = vmul.f32 %v690, %v703
  %v708 = vmul.f32 %v693, %v703
  %v709 = vmul.f32 %v696, %v703
  %v710 = vmul.f32 %v699, %v703
  %v711 = vmul.f32 %v702, %v703
  %v712 = vld [vmem:[%s3] sm:$0xf]
  %v713 = vld [vmem:[%s3 + $0x4] sm:$0xf]
  %v714 = vld [vmem:[%s4] sm:$0xff]
  %v715 = vld [vmem:[%s4 + $0x8] sm:$0xff]
  %v716 = vld [vmem:[%s5] sm:$0xf]
  %v717 = vld [vmem:[%s5 + $0x4] sm:$0xf]
  %v718 = vld [vmem:[%s5 + $0x8] sm:$0xf]
  %v719 = vld [vmem:[%s5 + $0xc] sm:$0xf]
  %v720 = vld [vmem:[%s5 + $0x10] sm:$0xf]
  %v721 = vld [vmem:[%s5 + $0x14] sm:$0xf]
  %v722 = vld [vmem:[%s5 + $0x18] sm:$0xf]
  %v723 = vld [vmem:[%s5 + $0x1c] sm:$0xf]
  %v724 = vld [vmem:[%s6] sm:$0xff]
  %v725 = vld [vmem:[%s6 + $0x8] sm:$0xff]
  %v726 = vld [vmem:[%s6 + $0x10] sm:$0xff]
  %v727 = vld [vmem:[%s6 + $0x18] sm:$0xff]
  %v728 = vld [vmem:[%s6 + $0x20] sm:$0xff]
  %v729 = vld [vmem:[%s6 + $0x28] sm:$0xff]
  %v730 = vld [vmem:[%s6 + $0x30] sm:$0xff]
  %v731 = vld [vmem:[%s6 + $0x38] sm:$0xff]
  %v732 = vpack.c.bf16 %v215, %v211
  %v733 = vpack.c.bf16 %v216, %v212
  %v734 = vpack.c.bf16 %v217, %v213
  %v735 = vpack.c.bf16 %v218, %v214
  %v736 = vpack.c.bf16 %v223, %v219
  %v737 = vpack.c.bf16 %v224, %v220
  %v738 = vpack.c.bf16 %v225, %v221
  %v739 = vpack.c.bf16 %v226, %v222
  %v740 = vpack.c.bf16 %v231, %v227
  %v741 = vpack.c.bf16 %v232, %v228
  %v742 = vpack.c.bf16 %v233, %v229
  %v743 = vpack.c.bf16 %v234, %v230
  %v744 = vpack.c.bf16 %v239, %v235
  %v745 = vpack.c.bf16 %v240, %v236
  %v746 = vpack.c.bf16 %v241, %v237
  %v747 = vpack.c.bf16 %v242, %v238
  %749 = vset.pattern.permute.xlu0 0
  %750 = vperm.xlu0 %749, %v714
  %v751 = vpop.permute.xlu0 %750
  %754 = vset.pattern.permute.xlu0 0
  %755 = vperm.xlu0 %754, %v715
  %v756 = vpop.permute.xlu0 %755
  %v760 = vunpack.c.l.b16 %v712
  %v761 = vunpack.c.l.b16 %v713
  %v762 = vpack.c.b16 %v761, %v760
  %v764 = vsel %vm492, %v762, 0
  %766 = vmatprep.subr.bf16.mxu0 0
  %767 = vmatpush1.bf16.msra.mxu0 0
  %768 = vmatprep.subr.bf16.mxu0 0
  %769 = vmatpush1.bf16.msra.mxu0 0
  %770 = vmatprep.subr.bf16.mxu0 0
  %771 = vmatpush1.bf16.msra.mxu0 0
  %772 = vmatprep.subr.bf16.mxu0 0
  %773 = vmatpush1.bf16.msra.mxu0 0
  %774 = vmatprep.subr.bf16.mxu0 %v745
  %775 = vmatpush1.bf16.msra.mxu0 %v744
  %776 = vmatprep.subr.bf16.mxu0 %v741
  %777 = vmatpush1.bf16.msra.mxu0 %v740
  %778 = vmatprep.subr.bf16.mxu0 %v737
  %779 = vmatpush1.bf16.msra.mxu0 %v736
  %780 = vmatprep.subr.bf16.mxu0 %v733
  %781 = vmatpush1.bf16.msra.mxu0 %v732
  %782 = vmatprep.subr.bf16.mxu0 0
  %783 = vmatpush2.bf16.msra.mxu0 0
  %784 = vmatprep.subr.bf16.mxu0 0
  %785 = vmatpush2.bf16.msra.mxu0 0
  %786 = vmatprep.subr.bf16.mxu0 0
  %787 = vmatpush2.bf16.msra.mxu0 0
  %788 = vmatprep.subr.bf16.mxu0 0
  %789 = vmatpush2.bf16.msra.mxu0 0
  %790 = vmatprep.subr.bf16.mxu0 0
  %791 = vmatpush2.bf16.msra.mxu0 0
  %792 = vmatprep.subr.bf16.mxu0 0
  %793 = vmatpush2.bf16.msra.mxu0 0
  %794 = vmatprep.subr.bf16.mxu0 0
  %795 = vmatpush2.bf16.msra.mxu0 0
  %796 = vmatprep.subr.bf16.mxu0 0
  %797 = vmatpush2.bf16.msra.mxu0 0
  %798 = vmatprep.mubr.bf16.mxu0 0
  %799 = vmatmul.mubr.bf16.gmra.mxu0 %v764
  %v800 = vpop.f32.mrf.mxu0
  %v801 = vadd.f32 %v751, %v800
  %v802 = vpop.f32.mrf.mxu0
  %v803 = vadd.f32 %v751, %v802
  %v804 = vpop.f32.mrf.mxu0
  %v805 = vadd.f32 %v756, %v804
  %v806 = vpop.f32.mrf.mxu0
  %v807 = vadd.f32 %v756, %v806
  %808 = vdwg.mxu0
  %809 = vmatprep.subr.bf16.mxu0 0
  %810 = vmatpush1.bf16.msra.mxu0 0
  %811 = vmatprep.subr.bf16.mxu0 0
  %812 = vmatpush1.bf16.msra.mxu0 0
  %813 = vmatprep.subr.bf16.mxu0 0
  %814 = vmatpush1.bf16.msra.mxu0 0
  %815 = vmatprep.subr.bf16.mxu0 0
  %816 = vmatpush1.bf16.msra.mxu0 0
  %817 = vmatprep.subr.bf16.mxu0 %v747
  %818 = vmatpush1.bf16.msra.mxu0 %v746
  %819 = vmatprep.subr.bf16.mxu0 %v743
  %820 = vmatpush1.bf16.msra.mxu0 %v742
  %821 = vmatprep.subr.bf16.mxu0 %v739
  %822 = vmatpush1.bf16.msra.mxu0 %v738
  %823 = vmatprep.subr.bf16.mxu0 %v735
  %824 = vmatpush1.bf16.msra.mxu0 %v734
  %825 = vmatprep.subr.bf16.mxu0 0
  %826 = vmatpush2.bf16.msra.mxu0 0
  %827 = vmatprep.subr.bf16.mxu0 0
  %828 = vmatpush2.bf16.msra.mxu0 0
  %829 = vmatprep.subr.bf16.mxu0 0
  %830 = vmatpush2.bf16.msra.mxu0 0
  %831 = vmatprep.subr.bf16.mxu0 0
  %832 = vmatpush2.bf16.msra.mxu0 0
  %833 = vmatprep.subr.bf16.mxu0 0
  %834 = vmatpush2.bf16.msra.mxu0 0
  %835 = vmatprep.subr.bf16.mxu0 0
  %836 = vmatpush2.bf16.msra.mxu0 0
  %837 = vmatprep.subr.bf16.mxu0 0
  %838 = vmatpush2.bf16.msra.mxu0 0
  %839 = vmatprep.subr.bf16.mxu0 0
  %840 = vmatpush2.bf16.msra.mxu0 0
  %841 = vmatprep.mubr.bf16.mxu0 0
  %842 = vmatmul.mubr.bf16.gmra.mxu0 %v764
  %v843 = vpop.f32.mrf.mxu0
  %v844 = vadd.f32 %v751, %v843
  %v845 = vpop.f32.mrf.mxu0
  %v846 = vadd.f32 %v751, %v845
  %v847 = vpop.f32.mrf.mxu0
  %v848 = vadd.f32 %v756, %v847
  %v849 = vpop.f32.mrf.mxu0
  %v850 = vadd.f32 %v756, %v849
  %851 = vdwg.mxu0
  %v852 = vmax.f32 %v801, 0.0
  %v853 = vmax.f32 %v803, 0.0
  %v854 = vmax.f32 %v844, 0.0
  %v855 = vmax.f32 %v846, 0.0
  %v856 = vmax.f32 %v805, 0.0
  %v857 = vmax.f32 %v807, 0.0
  %v858 = vmax.f32 %v848, 0.0
  %v859 = vmax.f32 %v850, 0.0
  %v860 = vpack.c.bf16 %v856, %v852
  %v861 = vpack.c.bf16 %v857, %v853
  %v862 = vpack.c.bf16 %v858, %v854
  %v863 = vpack.c.bf16 %v859, %v855
  %865 = vset.pattern.permute.xlu0 0
  %866 = vperm.xlu0 %865, %v724
  %v867 = vpop.permute.xlu0 %866
  %870 = vset.pattern.permute.xlu0 0
  %871 = vperm.xlu0 %870, %v725
  %v872 = vpop.permute.xlu0 %871
  %875 = vset.pattern.permute.xlu0 0
  %876 = vperm.xlu0 %875, %v726
  %v877 = vpop.permute.xlu0 %876
  %880 = vset.pattern.permute.xlu0 0
  %881 = vperm.xlu0 %880, %v727
  %v882 = vpop.permute.xlu0 %881
  %885 = vset.pattern.permute.xlu0 0
  %886 = vperm.xlu0 %885, %v728
  %v887 = vpop.permute.xlu0 %886
  %890 = vset.pattern.permute.xlu0 0
  %891 = vperm.xlu0 %890, %v729
  %v892 = vpop.permute.xlu0 %891
  %895 = vset.pattern.permute.xlu0 0
  %896 = vperm.xlu0 %895, %v730
  %v897 = vpop.permute.xlu0 %896
  %900 = vset.pattern.permute.xlu0 0
  %901 = vperm.xlu0 %900, %v731
  %v902 = vpop.permute.xlu0 %901
  %v912 = vunpack.c.l.b16 %v716
  %v913 = vunpack.c.l.b16 %v717
  %v914 = vunpack.c.l.b16 %v718
  %v915 = vunpack.c.l.b16 %v719
  %v916 = vunpack.c.l.b16 %v720
  %v917 = vunpack.c.l.b16 %v721
  %v918 = vunpack.c.l.b16 %v722
  %v919 = vunpack.c.l.b16 %v723
  %v920 = vpack.c.b16 %v913, %v912
  %v921 = vpack.c.b16 %v915, %v914
  %v922 = vpack.c.b16 %v917, %v916
  %v923 = vpack.c.b16 %v919, %v918
  %v925 = vsel %vm600, %v920, 0
  %v928 = vsel %vm600, %v921, 0
  %v931 = vsel %vm600, %v922, 0
  %v934 = vsel %vm600, %v923, 0
  %936 = vmatprep.subr.bf16.mxu0 0
  %937 = vmatpush1.bf16.msra.mxu0 0
  %938 = vmatprep.subr.bf16.mxu0 0
  %939 = vmatpush1.bf16.msra.mxu0 0
  %940 = vmatprep.subr.bf16.mxu0 0
  %941 = vmatpush1.bf16.msra.mxu0 0
  %942 = vmatprep.subr.bf16.mxu0 0
  %943 = vmatpush1.bf16.msra.mxu0 0
  %944 = vmatprep.subr.bf16.mxu0 0
  %945 = vmatpush1.bf16.msra.mxu0 0
  %946 = vmatprep.subr.bf16.mxu0 0
  %947 = vmatpush1.bf16.msra.mxu0 0
  %948 = vmatprep.subr.bf16.mxu0 0
  %949 = vmatpush1.bf16.msra.mxu0 0
  %950 = vmatprep.subr.bf16.mxu0 %v861
  %951 = vmatpush1.bf16.msra.mxu0 %v860
  %952 = vmatprep.subr.bf16.mxu0 0
  %953 = vmatpush2.bf16.msra.mxu0 0
  %954 = vmatprep.subr.bf16.mxu0 0
  %955 = vmatpush2.bf16.msra.mxu0 0
  %956 = vmatprep.subr.bf16.mxu0 0
  %957 = vmatpush2.bf16.msra.mxu0 0
  %958 = vmatprep.subr.bf16.mxu0 0
  %959 = vmatpush2.bf16.msra.mxu0 0
  %960 = vmatprep.subr.bf16.mxu0 0
  %961 = vmatpush2.bf16.msra.mxu0 0
  %962 = vmatprep.subr.bf16.mxu0 0
  %963 = vmatpush2.bf16.msra.mxu0 0
  %964 = vmatprep.subr.bf16.mxu0 0
  %965 = vmatpush2.bf16.msra.mxu0 0
  %966 = vmatprep.subr.bf16.mxu0 0
  %967 = vmatpush2.bf16.msra.mxu0 0
  %968 = vmatprep.mubr.bf16.mxu0 0
  %969 = vmatmul.mubr.bf16.gmra.mxu0 %v925
  %v970 = vpop.f32.mrf.mxu0
  %v971 = vadd.f32 %v867, %v970
  %v972 = vpop.f32.mrf.mxu0
  %v973 = vadd.f32 %v867, %v972
  %v974 = vpop.f32.mrf.mxu0
  %v975 = vadd.f32 %v872, %v974
  %v976 = vpop.f32.mrf.mxu0
  %v977 = vadd.f32 %v872, %v976
  %978 = vmatprep.mubr.bf16.mxu0 0
  %979 = vmatmul.mubr.bf16.gmra.mxu0 %v928
  %v980 = vpop.f32.mrf.mxu0
  %v981 = vadd.f32 %v877, %v980
  %v982 = vpop.f32.mrf.mxu0
  %v983 = vadd.f32 %v877, %v982
  %v984 = vpop.f32.mrf.mxu0
  %v985 = vadd.f32 %v882, %v984
  %v986 = vpop.f32.mrf.mxu0
  %v987 = vadd.f32 %v882, %v986
  %988 = vmatprep.mubr.bf16.mxu0 0
  %989 = vmatmul.mubr.bf16.gmra.mxu0 %v931
  %v990 = vpop.f32.mrf.mxu0
  %v991 = vadd.f32 %v887, %v990
  %v992 = vpop.f32.mrf.mxu0
  %v993 = vadd.f32 %v887, %v992
  %v994 = vpop.f32.mrf.mxu0
  %v995 = vadd.f32 %v892, %v994
  %v996 = vpop.f32.mrf.mxu0
  %v997 = vadd.f32 %v892, %v996
  %998 = vmatprep.mubr.bf16.mxu0 0
  %999 = vmatmul.mubr.bf16.gmra.mxu0 %v934
  %v1000 = vpop.f32.mrf.mxu0
  %v1001 = vadd.f32 %v897, %v1000
  %v1002 = vpop.f32.mrf.mxu0
  %v1003 = vadd.f32 %v897, %v1002
  %v1004 = vpop.f32.mrf.mxu0
  %v1005 = vadd.f32 %v902, %v1004
  %v1006 = vpop.f32.mrf.mxu0
  %v1007 = vadd.f32 %v902, %v1006
  %1008 = vdwg.mxu0
  %1009 = vmatprep.subr.bf16.mxu0 0
  %1010 = vmatpush1.bf16.msra.mxu0 0
  %1011 = vmatprep.subr.bf16.mxu0 0
  %1012 = vmatpush1.bf16.msra.mxu0 0
  %1013 = vmatprep.subr.bf16.mxu0 0
  %1014 = vmatpush1.bf16.msra.mxu0 0
  %1015 = vmatprep.subr.bf16.mxu0 0
  %1016 = vmatpush1.bf16.msra.mxu0 0
  %1017 = vmatprep.subr.bf16.mxu0 0
  %1018 = vmatpush1.bf16.msra.mxu0 0
  %1019 = vmatprep.subr.bf16.mxu0 0
  %1020 = vmatpush1.bf16.msra.mxu0 0
  %1021 = vmatprep.subr.bf16.mxu0 0
  %1022 = vmatpush1.bf16.msra.mxu0 0
  %1023 = vmatprep.subr.bf16.mxu0 %v863
  %1024 = vmatpush1.bf16.msra.mxu0 %v862
  %1025 = vmatprep.subr.bf16.mxu0 0
  %1026 = vmatpush2.bf16.msra.mxu0 0
  %1027 = vmatprep.subr.bf16.mxu0 0
  %1028 = vmatpush2.bf16.msra.mxu0 0
  %1029 = vmatprep.subr.bf16.mxu0 0
  %1030 = vmatpush2.bf16.msra.mxu0 0
  %1031 = vmatprep.subr.bf16.mxu0 0
  %1032 = vmatpush2.bf16.msra.mxu0 0
  %1033 = vmatprep.subr.bf16.mxu0 0
  %1034 = vmatpush2.bf16.msra.mxu0 0
  %1035 = vmatprep.subr.bf16.mxu0 0
  %1036 = vmatpush2.bf16.msra.mxu0 0
  %1037 = vmatprep.subr.bf16.mxu0 0
  %1038 = vmatpush2.bf16.msra.mxu0 0
  %1039 = vmatprep.subr.bf16.mxu0 0
  %1040 = vmatpush2.bf16.msra.mxu0 0
  %1041 = vmatprep.mubr.bf16.mxu0 0
  %1042 = vmatmul.mubr.bf16.gmra.mxu0 %v925
  %v1043 = vpop.f32.mrf.mxu0
  %v1044 = vadd.f32 %v867, %v1043
  %v1045 = vpop.f32.mrf.mxu0
  %v1046 = vadd.f32 %v867, %v1045
  %v1047 = vpop.f32.mrf.mxu0
  %v1048 = vadd.f32 %v872, %v1047
  %v1049 = vpop.f32.mrf.mxu0
  %v1050 = vadd.f32 %v872, %v1049
  %1051 = vmatprep.mubr.bf16.mxu0 0
  %1052 = vmatmul.mubr.bf16.gmra.mxu0 %v928
  %v1053 = vpop.f32.mrf.mxu0
  %v1054 = vadd.f32 %v877, %v1053
  %v1055 = vpop.f32.mrf.mxu0
  %v1056 = vadd.f32 %v877, %v1055
  %v1057 = vpop.f32.mrf.mxu0
  %v1058 = vadd.f32 %v882, %v1057
  %v1059 = vpop.f32.mrf.mxu0
  %v1060 = vadd.f32 %v882, %v1059
  %1061 = vmatprep.mubr.bf16.mxu0 0
  %1062 = vmatmul.mubr.bf16.gmra.mxu0 %v931
  %v1063 = vpop.f32.mrf.mxu0
  %v1064 = vadd.f32 %v887, %v1063
  %v1065 = vpop.f32.mrf.mxu0
  %v1066 = vadd.f32 %v887, %v1065
  %v1067 = vpop.f32.mrf.mxu0
  %v1068 = vadd.f32 %v892, %v1067
  %v1069 = vpop.f32.mrf.mxu0
  %v1070 = vadd.f32 %v892, %v1069
  %1071 = vmatprep.mubr.bf16.mxu0 0
  %1072 = vmatmul.mubr.bf16.gmra.mxu0 %v934
  %v1073 = vpop.f32.mrf.mxu0
  %v1074 = vadd.f32 %v897, %v1073
  %v1075 = vpop.f32.mrf.mxu0
  %v1076 = vadd.f32 %v897, %v1075
  %v1077 = vpop.f32.mrf.mxu0
  %v1078 = vadd.f32 %v902, %v1077
  %v1079 = vpop.f32.mrf.mxu0
  %v1080 = vadd.f32 %v902, %v1079
  %1081 = vdwg.mxu0
  %v1082 = vadd.f32 %v971, %v704
  %v1083 = vadd.f32 %v973, %v704
  %v1084 = vadd.f32 %v1044, %v704
  %v1085 = vadd.f32 %v1046, %v704
  %v1086 = vadd.f32 %v975, %v705
  %v1087 = vadd.f32 %v977, %v705
  %v1088 = vadd.f32 %v1048, %v705
  %v1089 = vadd.f32 %v1050, %v705
  %v1090 = vadd.f32 %v981, %v706
  %v1091 = vadd.f32 %v983, %v706
  %v1092 = vadd.f32 %v1054, %v706
  %v1093 = vadd.f32 %v1056, %v706
  %v1094 = vadd.f32 %v985, %v707
  %v1095 = vadd.f32 %v987, %v707
  %v1096 = vadd.f32 %v1058, %v707
  %v1097 = vadd.f32 %v1060, %v707
  %v1098 = vadd.f32 %v991, %v708
  %v1099 = vadd.f32 %v993, %v708
  %v1100 = vadd.f32 %v1064, %v708
  %v1101 = vadd.f32 %v1066, %v708
  %v1102 = vadd.f32 %v995, %v709
  %v1103 = vadd.f32 %v997, %v709
  %v1104 = vadd.f32 %v1068, %v709
  %v1105 = vadd.f32 %v1070, %v709
  %v1106 = vadd.f32 %v1001, %v710
  %v1107 = vadd.f32 %v1003, %v710
  %v1108 = vadd.f32 %v1074, %v710
  %v1109 = vadd.f32 %v1076, %v710
  %v1110 = vadd.f32 %v1005, %v711
  %v1111 = vadd.f32 %v1007, %v711
  %v1112 = vadd.f32 %v1078, %v711
  %v1113 = vadd.f32 %v1080, %v711
  %v1114 = vxor.u32 %v1082, 2147483648
  %v1115 = vxor.u32 %v1083, 2147483648
  %v1116 = vxor.u32 %v1084, 2147483648
  %v1117 = vxor.u32 %v1085, 2147483648
  %v1118 = vxor.u32 %v1086, 2147483648
  %v1119 = vxor.u32 %v1087, 2147483648
  %v1120 = vxor.u32 %v1088, 2147483648
  %v1121 = vxor.u32 %v1089, 2147483648
  %v1122 = vxor.u32 %v1090, 2147483648
  %v1123 = vxor.u32 %v1091, 2147483648
  %v1124 = vxor.u32 %v1092, 2147483648
  %v1125 = vxor.u32 %v1093, 2147483648
  %v1126 = vxor.u32 %v1094, 2147483648
  %v1127 = vxor.u32 %v1095, 2147483648
  %v1128 = vxor.u32 %v1096, 2147483648
  %v1129 = vxor.u32 %v1097, 2147483648
  %v1130 = vxor.u32 %v1098, 2147483648
  %v1131 = vxor.u32 %v1099, 2147483648
  %v1132 = vxor.u32 %v1100, 2147483648
  %v1133 = vxor.u32 %v1101, 2147483648
  %v1134 = vxor.u32 %v1102, 2147483648
  %v1135 = vxor.u32 %v1103, 2147483648
  %v1136 = vxor.u32 %v1104, 2147483648
  %v1137 = vxor.u32 %v1105, 2147483648
  %v1138 = vxor.u32 %v1106, 2147483648
  %v1139 = vxor.u32 %v1107, 2147483648
  %v1140 = vxor.u32 %v1108, 2147483648
  %v1141 = vxor.u32 %v1109, 2147483648
  %v1142 = vxor.u32 %v1110, 2147483648
  %v1143 = vxor.u32 %v1111, 2147483648
  %v1144 = vxor.u32 %v1112, 2147483648
  %v1145 = vxor.u32 %v1113, 2147483648
  %v1146 = vmul.f32 %v1114, 1.442695
  %v1147 = vpow.pop %v1146
  %v1148 = vmul.f32 %v1115, 1.442695
  %v1149 = vpow.pop %v1148
  %v1150 = vmul.f32 %v1116, 1.442695
  %v1151 = vpow.pop %v1150
  %v1152 = vmul.f32 %v1117, 1.442695
  %v1153 = vpow.pop %v1152
  %v1154 = vmul.f32 %v1118, 1.442695
  %v1155 = vpow.pop %v1154
  %v1156 = vmul.f32 %v1119, 1.442695
  %v1157 = vpow.pop %v1156
  %v1158 = vmul.f32 %v1120, 1.442695
  %v1159 = vpow.pop %v1158
  %v1160 = vmul.f32 %v1121, 1.442695
  %v1161 = vpow.pop %v1160
  %v1162 = vmul.f32 %v1122, 1.442695
  %v1163 = vpow.pop %v1162
  %v1164 = vmul.f32 %v1123, 1.442695
  %v1165 = vpow.pop %v1164
  %v1166 = vmul.f32 %v1124, 1.442695
  %v1167 = vpow.pop %v1166
  %v1168 = vmul.f32 %v1125, 1.442695
  %v1169 = vpow.pop %v1168
  %v1170 = vmul.f32 %v1126, 1.442695
  %v1171 = vpow.pop %v1170
  %v1172 = vmul.f32 %v1127, 1.442695
  %v1173 = vpow.pop %v1172
  %v1174 = vmul.f32 %v1128, 1.442695
  %v1175 = vpow.pop %v1174
  %v1176 = vmul.f32 %v1129, 1.442695
  %v1177 = vpow.pop %v1176
  %v1178 = vmul.f32 %v1130, 1.442695
  %v1179 = vpow.pop %v1178
  %v1180 = vmul.f32 %v1131, 1.442695
  %v1181 = vpow.pop %v1180
  %v1182 = vmul.f32 %v1132, 1.442695
  %v1183 = vpow.pop %v1182
  %v1184 = vmul.f32 %v1133, 1.442695
  %v1185 = vpow.pop %v1184
  %v1186 = vmul.f32 %v1134, 1.442695
  %v1187 = vpow.pop %v1186
  %v1188 = vmul.f32 %v1135, 1.442695
  %v1189 = vpow.pop %v1188
  %v1190 = vmul.f32 %v1136, 1.442695
  %v1191 = vpow.pop %v1190
  %v1192 = vmul.f32 %v1137, 1.442695
  %v1193 = vpow.pop %v1192
  %v1194 = vmul.f32 %v1138, 1.442695
  %v1195 = vpow.pop %v1194
  %v1196 = vmul.f32 %v1139, 1.442695
  %v1197 = vpow.pop %v1196
  %v1198 = vmul.f32 %v1140, 1.442695
  %v1199 = vpow.pop %v1198
  %v1200 = vmul.f32 %v1141, 1.442695
  %v1201 = vpow.pop %v1200
  %v1202 = vmul.f32 %v1142, 1.442695
  %v1203 = vpow.pop %v1202
  %v1204 = vmul.f32 %v1143, 1.442695
  %v1205 = vpow.pop %v1204
  %v1206 = vmul.f32 %v1144, 1.442695
  %v1207 = vpow.pop %v1206
  %v1208 = vmul.f32 %v1145, 1.442695
  %v1209 = vpow.pop %v1208
  %v1210 = vadd.f32 %v1147, 1.0
  %v1211 = vadd.f32 %v1149, 1.0
  %v1212 = vadd.f32 %v1151, 1.0
  %v1213 = vadd.f32 %v1153, 1.0
  %v1214 = vadd.f32 %v1155, 1.0
  %v1215 = vadd.f32 %v1157, 1.0
  %v1216 = vadd.f32 %v1159, 1.0
  %v1217 = vadd.f32 %v1161, 1.0
  %v1218 = vadd.f32 %v1163, 1.0
  %v1219 = vadd.f32 %v1165, 1.0
  %v1220 = vadd.f32 %v1167, 1.0
  %v1221 = vadd.f32 %v1169, 1.0
  %v1222 = vadd.f32 %v1171, 1.0
  %v1223 = vadd.f32 %v1173, 1.0
  %v1224 = vadd.f32 %v1175, 1.0
  %v1225 = vadd.f32 %v1177, 1.0
  %v1226 = vadd.f32 %v1179, 1.0
  %v1227 = vadd.f32 %v1181, 1.0
  %v1228 = vadd.f32 %v1183, 1.0
  %v1229 = vadd.f32 %v1185, 1.0
  %v1230 = vadd.f32 %v1187, 1.0
  %v1231 = vadd.f32 %v1189, 1.0
  %v1232 = vadd.f32 %v1191, 1.0
  %v1233 = vadd.f32 %v1193, 1.0
  %v1234 = vadd.f32 %v1195, 1.0
  %v1235 = vadd.f32 %v1197, 1.0
  %v1236 = vadd.f32 %v1199, 1.0
  %v1237 = vadd.f32 %v1201, 1.0
  %v1238 = vadd.f32 %v1203, 1.0
  %v1239 = vadd.f32 %v1205, 1.0
  %v1240 = vadd.f32 %v1207, 1.0
  %v1241 = vadd.f32 %v1209, 1.0
  %v1242 = vrcp.pop %v1210
  %v1243 = vmul.f32 1.0, %v1242
  %v1244 = vrcp.pop %v1211
  %v1245 = vmul.f32 1.0, %v1244
  %v1246 = vrcp.pop %v1212
  %v1247 = vmul.f32 1.0, %v1246
  %v1248 = vrcp.pop %v1213
  %v1249 = vmul.f32 1.0, %v1248
  %v1250 = vrcp.pop %v1214
  %v1251 = vmul.f32 1.0, %v1250
  %v1252 = vrcp.pop %v1215
  %v1253 = vmul.f32 1.0, %v1252
  %v1254 = vrcp.pop %v1216
  %v1255 = vmul.f32 1.0, %v1254
  %v1256 = vrcp.pop %v1217
  %v1257 = vmul.f32 1.0, %v1256
  %v1258 = vrcp.pop %v1218
  %v1259 = vmul.f32 1.0, %v1258
  %v1260 = vrcp.pop %v1219
  %v1261 = vmul.f32 1.0, %v1260
  %v1262 = vrcp.pop %v1220
  %v1263 = vmul.f32 1.0, %v1262
  %v1264 = vrcp.pop %v1221
  %v1265 = vmul.f32 1.0, %v1264
  %v1266 = vrcp.pop %v1222
  %v1267 = vmul.f32 1.0, %v1266
  %v1268 = vrcp.pop %v1223
  %v1269 = vmul.f32 1.0, %v1268
  %v1270 = vrcp.pop %v1224
  %v1271 = vmul.f32 1.0, %v1270
  %v1272 = vrcp.pop %v1225
  %v1273 = vmul.f32 1.0, %v1272
  %v1274 = vrcp.pop %v1226
  %v1275 = vmul.f32 1.0, %v1274
  %v1276 = vrcp.pop %v1227
  %v1277 = vmul.f32 1.0, %v1276
  %v1278 = vrcp.pop %v1228
  %v1279 = vmul.f32 1.0, %v1278
  %v1280 = vrcp.pop %v1229
  %v1281 = vmul.f32 1.0, %v1280
  %v1282 = vrcp.pop %v1230
  %v1283 = vmul.f32 1.0, %v1282
  %v1284 = vrcp.pop %v1231
  %v1285 = vmul.f32 1.0, %v1284
  %v1286 = vrcp.pop %v1232
  %v1287 = vmul.f32 1.0, %v1286
  %v1288 = vrcp.pop %v1233
  %v1289 = vmul.f32 1.0, %v1288
  %v1290 = vrcp.pop %v1234
  %v1291 = vmul.f32 1.0, %v1290
  %v1292 = vrcp.pop %v1235
  %v1293 = vmul.f32 1.0, %v1292
  %v1294 = vrcp.pop %v1236
  %v1295 = vmul.f32 1.0, %v1294
  %v1296 = vrcp.pop %v1237
  %v1297 = vmul.f32 1.0, %v1296
  %v1298 = vrcp.pop %v1238
  %v1299 = vmul.f32 1.0, %v1298
  %v1300 = vrcp.pop %v1239
  %v1301 = vmul.f32 1.0, %v1300
  %v1302 = vrcp.pop %v1240
  %v1303 = vmul.f32 1.0, %v1302
  %v1304 = vrcp.pop %v1241
  %v1305 = vmul.f32 1.0, %v1304
  %v1306 = vmul.f32 %v179, %v1243
  %v1307 = vmul.f32 %v180, %v1245
  %v1308 = vmul.f32 %v181, %v1247
  %v1309 = vmul.f32 %v182, %v1249
  %v1310 = vmul.f32 %v183, %v1251
  %v1311 = vmul.f32 %v184, %v1253
  %v1312 = vmul.f32 %v185, %v1255
  %v1313 = vmul.f32 %v186, %v1257
  %v1314 = vmul.f32 %v187, %v1259
  %v1315 = vmul.f32 %v188, %v1261
  %v1316 = vmul.f32 %v189, %v1263
  %v1317 = vmul.f32 %v190, %v1265
  %v1318 = vmul.f32 %v191, %v1267
  %v1319 = vmul.f32 %v192, %v1269
  %v1320 = vmul.f32 %v193, %v1271
  %v1321 = vmul.f32 %v194, %v1273
  %v1322 = vmul.f32 %v195, %v1275
  %v1323 = vmul.f32 %v196, %v1277
  %v1324 = vmul.f32 %v197, %v1279
  %v1325 = vmul.f32 %v198, %v1281
  %v1326 = vmul.f32 %v199, %v1283
  %v1327 = vmul.f32 %v200, %v1285
  %v1328 = vmul.f32 %v201, %v1287
  %v1329 = vmul.f32 %v202, %v1289
  %v1330 = vmul.f32 %v203, %v1291
  %v1331 = vmul.f32 %v204, %v1293
  %v1332 = vmul.f32 %v205, %v1295
  %v1333 = vmul.f32 %v206, %v1297
  %v1334 = vmul.f32 %v207, %v1299
  %v1335 = vmul.f32 %v208, %v1301
  %v1336 = vmul.f32 %v209, %v1303
  %v1337 = vmul.f32 %v210, %v1305
  %v1338 = vadd.f32 %v83, %v1306
  %v1339 = vadd.f32 %v84, %v1307
  %v1340 = vadd.f32 %v85, %v1308
  %v1341 = vadd.f32 %v86, %v1309
  %v1342 = vadd.f32 %v87, %v1310
  %v1343 = vadd.f32 %v88, %v1311
  %v1344 = vadd.f32 %v89, %v1312
  %v1345 = vadd.f32 %v90, %v1313
  %v1346 = vadd.f32 %v91, %v1314
  %v1347 = vadd.f32 %v92, %v1315
  %v1348 = vadd.f32 %v93, %v1316
  %v1349 = vadd.f32 %v94, %v1317
  %v1350 = vadd.f32 %v95, %v1318
  %v1351 = vadd.f32 %v96, %v1319
  %v1352 = vadd.f32 %v97, %v1320
  %v1353 = vadd.f32 %v98, %v1321
  %v1354 = vadd.f32 %v99, %v1322
  %v1355 = vadd.f32 %v100, %v1323
  %v1356 = vadd.f32 %v101, %v1324
  %v1357 = vadd.f32 %v102, %v1325
  %v1358 = vadd.f32 %v103, %v1326
  %v1359 = vadd.f32 %v104, %v1327
  %v1360 = vadd.f32 %v105, %v1328
  %v1361 = vadd.f32 %v106, %v1329
  %v1362 = vadd.f32 %v107, %v1330
  %v1363 = vadd.f32 %v108, %v1331
  %v1364 = vadd.f32 %v109, %v1332
  %v1365 = vadd.f32 %v110, %v1333
  %v1366 = vadd.f32 %v111, %v1334
  %v1367 = vadd.f32 %v112, %v1335
  %v1368 = vadd.f32 %v113, %v1336
  %v1369 = vadd.f32 %v114, %v1337
  %1370 = vmatprep.subr.mxu0 0.0
  %1371 = vmatpush1.msra.mxu0 %v130
  %1372 = vmatprep.subr.mxu0 0.0
  %1373 = vmatpush1.msra.mxu0 %v129
  %1374 = vmatprep.subr.mxu0 0.0
  %1375 = vmatpush1.msra.mxu0 %v128
  %1376 = vmatprep.subr.mxu0 0.0
  %1377 = vmatpush1.msra.mxu0 %v127
  %1378 = vmatprep.subr.mxu0 0.0
  %1379 = vmatpush1.msra.mxu0 %v126
  %1380 = vmatprep.subr.mxu0 0.0
  %1381 = vmatpush1.msra.mxu0 %v125
  %1382 = vmatprep.subr.mxu0 0.0
  %1383 = vmatpush1.msra.mxu0 %v124
  %1384 = vmatprep.subr.mxu0 0.0
  %1385 = vmatpush1.msra.mxu0 %v123
  %1386 = vmatprep.subr.mxu0 0.0
  %1387 = vmatpush1.msra.mxu0 %v122
  %1388 = vmatprep.subr.mxu0 0.0
  %1389 = vmatpush1.msra.mxu0 %v121
  %1390 = vmatprep.subr.mxu0 0.0
  %1391 = vmatpush1.msra.mxu0 %v120
  %1392 = vmatprep.subr.mxu0 0.0
  %1393 = vmatpush1.msra.mxu0 %v119
  %1394 = vmatprep.subr.mxu0 0.0
  %1395 = vmatpush1.msra.mxu0 %v118
  %1396 = vmatprep.subr.mxu0 0.0
  %1397 = vmatpush1.msra.mxu0 %v117
  %1398 = vmatprep.subr.mxu0 0.0
  %1399 = vmatpush1.msra.mxu0 %v116
  %1400 = vmatprep.subr.mxu0 0.0
  %1401 = vmatpush1.msra.mxu0 %v115
  %1402 = vmatprep.subr.mxu0 0.0
  %1403 = vmatpush2.msra.mxu0 %v146
  %1404 = vmatprep.subr.mxu0 0.0
  %1405 = vmatpush2.msra.mxu0 %v145
  %1406 = vmatprep.subr.mxu0 0.0
  %1407 = vmatpush2.msra.mxu0 %v144
  %1408 = vmatprep.subr.mxu0 0.0
  %1409 = vmatpush2.msra.mxu0 %v143
  %1410 = vmatprep.subr.mxu0 0.0
  %1411 = vmatpush2.msra.mxu0 %v142
  %1412 = vmatprep.subr.mxu0 0.0
  %1413 = vmatpush2.msra.mxu0 %v141
  %1414 = vmatprep.subr.mxu0 0.0
  %1415 = vmatpush2.msra.mxu0 %v140
  %1416 = vmatprep.subr.mxu0 0.0
  %1417 = vmatpush2.msra.mxu0 %v139
  %1418 = vmatprep.subr.mxu0 0.0
  %1419 = vmatpush2.msra.mxu0 %v138
  %1420 = vmatprep.subr.mxu0 0.0
  %1421 = vmatpush2.msra.mxu0 %v137
  %1422 = vmatprep.subr.mxu0 0.0
  %1423 = vmatpush2.msra.mxu0 %v136
  %1424 = vmatprep.subr.mxu0 0.0
  %1425 = vmatpush2.msra.mxu0 %v135
  %1426 = vmatprep.subr.mxu0 0.0
  %1427 = vmatpush2.msra.mxu0 %v134
  %1428 = vmatprep.subr.mxu0 0.0
  %1429 = vmatpush2.msra.mxu0 %v133
  %1430 = vmatprep.subr.mxu0 0.0
  %1431 = vmatpush2.msra.mxu0 %v132
  %1432 = vmatprep.subr.mxu0 0.0
  %1433 = vmatpush2.msra.mxu0 %v131
  %1434 = vmatprep.mubr.f32.mxu0 %v1339
  %1435 = vmatmul.mubr.f32.gmra.mxu0 %v1338
  %v1436 = vpop.f32.mrf.mxu0
  %v1437 = vadd.f32 0.0, %v1436
  %v1438 = vpop.f32.mrf.mxu0
  %1439 = vmatprep.mubr.f32.mxu0 %v1343
  %1440 = vmatmul.mubr.f32.gmra.mxu0 %v1342
  %v1441 = vpop.f32.mrf.mxu0
  %v1442 = vadd.f32 0.0, %v1441
  %v1443 = vpop.f32.mrf.mxu0
  %1444 = vmatprep.mubr.f32.mxu0 %v1347
  %1445 = vmatmul.mubr.f32.gmra.mxu0 %v1346
  %v1446 = vpop.f32.mrf.mxu0
  %v1447 = vadd.f32 0.0, %v1446
  %v1448 = vpop.f32.mrf.mxu0
  %1449 = vmatprep.mubr.f32.mxu0 %v1351
  %1450 = vmatmul.mubr.f32.gmra.mxu0 %v1350
  %v1451 = vpop.f32.mrf.mxu0
  %v1452 = vadd.f32 0.0, %v1451
  %v1453 = vpop.f32.mrf.mxu0
  %1454 = vmatprep.mubr.f32.mxu0 %v1355
  %1455 = vmatmul.mubr.f32.gmra.mxu0 %v1354
  %v1456 = vpop.f32.mrf.mxu0
  %v1457 = vadd.f32 0.0, %v1456
  %v1458 = vpop.f32.mrf.mxu0
  %1459 = vmatprep.mubr.f32.mxu0 %v1359
  %1460 = vmatmul.mubr.f32.gmra.mxu0 %v1358
  %v1461 = vpop.f32.mrf.mxu0
  %v1462 = vadd.f32 0.0, %v1461
  %v1463 = vpop.f32.mrf.mxu0
  %1464 = vmatprep.mubr.f32.mxu0 %v1363
  %1465 = vmatmul.mubr.f32.gmra.mxu0 %v1362
  %v1466 = vpop.f32.mrf.mxu0
  %v1467 = vadd.f32 0.0, %v1466
  %v1468 = vpop.f32.mrf.mxu0
  %1469 = vmatprep.mubr.f32.mxu0 %v1367
  %1470 = vmatmul.mubr.f32.gmra.mxu0 %v1366
  %v1471 = vpop.f32.mrf.mxu0
  %v1472 = vadd.f32 0.0, %v1471
  %v1473 = vpop.f32.mrf.mxu0
  %1474 = vdwg.mxu0
  %1475 = vmatprep.subr.mxu0 0.0
  %1476 = vmatpush1.msra.mxu0 %v162
  %1477 = vmatprep.subr.mxu0 0.0
  %1478 = vmatpush1.msra.mxu0 %v161
  %1479 = vmatprep.subr.mxu0 0.0
  %1480 = vmatpush1.msra.mxu0 %v160
  %1481 = vmatprep.subr.mxu0 0.0
  %1482 = vmatpush1.msra.mxu0 %v159
  %1483 = vmatprep.subr.mxu0 0.0
  %1484 = vmatpush1.msra.mxu0 %v158
  %1485 = vmatprep.subr.mxu0 0.0
  %1486 = vmatpush1.msra.mxu0 %v157
  %1487 = vmatprep.subr.mxu0 0.0
  %1488 = vmatpush1.msra.mxu0 %v156
  %1489 = vmatprep.subr.mxu0 0.0
  %1490 = vmatpush1.msra.mxu0 %v155
  %1491 = vmatprep.subr.mxu0 0.0
  %1492 = vmatpush1.msra.mxu0 %v154
  %1493 = vmatprep.subr.mxu0 0.0
  %1494 = vmatpush1.msra.mxu0 %v153
  %1495 = vmatprep.subr.mxu0 0.0
  %1496 = vmatpush1.msra.mxu0 %v152
  %1497 = vmatprep.subr.mxu0 0.0
  %1498 = vmatpush1.msra.mxu0 %v151
  %1499 = vmatprep.subr.mxu0 0.0
  %1500 = vmatpush1.msra.mxu0 %v150
  %1501 = vmatprep.subr.mxu0 0.0
  %1502 = vmatpush1.msra.mxu0 %v149
  %1503 = vmatprep.subr.mxu0 0.0
  %1504 = vmatpush1.msra.mxu0 %v148
  %1505 = vmatprep.subr.mxu0 0.0
  %1506 = vmatpush1.msra.mxu0 %v147
  %1507 = vmatprep.subr.mxu0 0.0
  %1508 = vmatpush2.msra.mxu0 %v178
  %1509 = vmatprep.subr.mxu0 0.0
  %1510 = vmatpush2.msra.mxu0 %v177
  %1511 = vmatprep.subr.mxu0 0.0
  %1512 = vmatpush2.msra.mxu0 %v176
  %1513 = vmatprep.subr.mxu0 0.0
  %1514 = vmatpush2.msra.mxu0 %v175
  %1515 = vmatprep.subr.mxu0 0.0
  %1516 = vmatpush2.msra.mxu0 %v174
  %1517 = vmatprep.subr.mxu0 0.0
  %1518 = vmatpush2.msra.mxu0 %v173
  %1519 = vmatprep.subr.mxu0 0.0
  %1520 = vmatpush2.msra.mxu0 %v172
  %1521 = vmatprep.subr.mxu0 0.0
  %1522 = vmatpush2.msra.mxu0 %v171
  %1523 = vmatprep.subr.mxu0 0.0
  %1524 = vmatpush2.msra.mxu0 %v170
  %1525 = vmatprep.subr.mxu0 0.0
  %1526 = vmatpush2.msra.mxu0 %v169
  %1527 = vmatprep.subr.mxu0 0.0
  %1528 = vmatpush2.msra.mxu0 %v168
  %1529 = vmatprep.subr.mxu0 0.0
  %1530 = vmatpush2.msra.mxu0 %v167
  %1531 = vmatprep.subr.mxu0 0.0
  %1532 = vmatpush2.msra.mxu0 %v166
  %1533 = vmatprep.subr.mxu0 0.0
  %1534 = vmatpush2.msra.mxu0 %v165
  %1535 = vmatprep.subr.mxu0 0.0
  %1536 = vmatpush2.msra.mxu0 %v164
  %1537 = vmatprep.subr.mxu0 0.0
  %1538 = vmatpush2.msra.mxu0 %v163
  %1539 = vmatprep.mubr.f32.mxu0 %v1341
  %1540 = vmatmul.mubr.f32.gmra.mxu0 %v1340
  %v1541 = vpop.f32.mrf.mxu0
  %v1542 = vadd.f32 %v1437, %v1541
  %v1543 = vpop.f32.mrf.mxu0
  %1544 = vmatprep.mubr.f32.mxu0 %v1345
  %1545 = vmatmul.mubr.f32.gmra.mxu0 %v1344
  %v1546 = vpop.f32.mrf.mxu0
  %v1547 = vadd.f32 %v1442, %v1546
  %v1548 = vpop.f32.mrf.mxu0
  %1549 = vmatprep.mubr.f32.mxu0 %v1349
  %1550 = vmatmul.mubr.f32.gmra.mxu0 %v1348
  %v1551 = vpop.f32.mrf.mxu0
  %v1552 = vadd.f32 %v1447, %v1551
  %v1553 = vpop.f32.mrf.mxu0
  %1554 = vmatprep.mubr.f32.mxu0 %v1353
  %1555 = vmatmul.mubr.f32.gmra.mxu0 %v1352
  %v1556 = vpop.f32.mrf.mxu0
  %v1557 = vadd.f32 %v1452, %v1556
  %v1558 = vpop.f32.mrf.mxu0
  %1559 = vmatprep.mubr.f32.mxu0 %v1357
  %1560 = vmatmul.mubr.f32.gmra.mxu0 %v1356
  %v1561 = vpop.f32.mrf.mxu0
  %v1562 = vadd.f32 %v1457, %v1561
  %v1563 = vpop.f32.mrf.mxu0
  %1564 = vmatprep.mubr.f32.mxu0 %v1361
  %1565 = vmatmul.mubr.f32.gmra.mxu0 %v1360
  %v1566 = vpop.f32.mrf.mxu0
  %v1567 = vadd.f32 %v1462, %v1566
  %v1568 = vpop.f32.mrf.mxu0
  %1569 = vmatprep.mubr.f32.mxu0 %v1365
  %1570 = vmatmul.mubr.f32.gmra.mxu0 %v1364
  %v1571 = vpop.f32.mrf.mxu0
  %v1572 = vadd.f32 %v1467, %v1571
  %v1573 = vpop.f32.mrf.mxu0
  %1574 = vmatprep.mubr.f32.mxu0 %v1369
  %1575 = vmatmul.mubr.f32.gmra.mxu0 %v1368
  %v1576 = vpop.f32.mrf.mxu0
  %v1577 = vadd.f32 %v1472, %v1576
  %v1578 = vpop.f32.mrf.mxu0
  %1579 = vdwg.mxu0
  %v1580 = vpack.c.bf16 %v1547, %v1542
  %v1581 = vpack.c.bf16 %v1557, %v1552
  %v1582 = vpack.c.bf16 %v1567, %v1562
  %v1583 = vpack.c.bf16 %v1577, %v1572
  %1584 = vmatprep.subr.bf16.mxu0 0
  %1585 = vmatpush1.bf16.msra.mxu0 0
  %1586 = vmatprep.subr.bf16.mxu0 0
  %1587 = vmatpush1.bf16.msra.mxu0 0
  %1588 = vmatprep.subr.bf16.mxu0 0
  %1589 = vmatpush1.bf16.msra.mxu0 0
  %1590 = vmatprep.subr.bf16.mxu0 0
  %1591 = vmatpush1.bf16.msra.mxu0 0
  %1592 = vmatprep.subr.bf16.mxu0 0
  %1593 = vmatpush1.bf16.msra.mxu0 %v1583
  %1594 = vmatprep.subr.bf16.mxu0 0
  %1595 = vmatpush1.bf16.msra.mxu0 %v1582
  %1596 = vmatprep.subr.bf16.mxu0 0
  %1597 = vmatpush1.bf16.msra.mxu0 %v1581
  %1598 = vmatprep.subr.bf16.mxu0 0
  %1599 = vmatpush1.bf16.msra.mxu0 %v1580
  %1600 = vmatprep.subr.bf16.mxu0 0
  %1601 = vmatpush2.bf16.msra.mxu0 0
  %1602 = vmatprep.subr.bf16.mxu0 0
  %1603 = vmatpush2.bf16.msra.mxu0 0
  %1604 = vmatprep.subr.bf16.mxu0 0
  %1605 = vmatpush2.bf16.msra.mxu0 0
  %1606 = vmatprep.subr.bf16.mxu0 0
  %1607 = vmatpush2.bf16.msra.mxu0 0
  %1608 = vmatprep.subr.bf16.mxu0 0
  %1609 = vmatpush2.bf16.msra.mxu0 0
  %1610 = vmatprep.subr.bf16.mxu0 0
  %1611 = vmatpush2.bf16.msra.mxu0 0
  %1612 = vmatprep.subr.bf16.mxu0 0
  %1613 = vmatpush2.bf16.msra.mxu0 0
  %1614 = vmatprep.subr.bf16.mxu0 0
  %1615 = vmatpush2.bf16.msra.mxu0 0
  %1616 = vmatprep.mubr.bf16.mxu0 0
  %1617 = vmatmul.mubr.bf16.gmra.mxu0 %v494
  %v1618 = vpop.f32.mrf.mxu0
  %v1619 = vadd.f32 %v480, %v1618
  %v1620 = vpop.f32.mrf.mxu0
  %v1621 = vpop.f32.mrf.mxu0
  %v1622 = vadd.f32 %v485, %v1621
  %v1623 = vpop.f32.mrf.mxu0
  %1624 = vdwg.mxu0
  %v1625 = vmax.f32 %v1619, 0.0
  %v1626 = vmax.f32 %v1622, 0.0
  %v1627 = vpack.c.bf16 %v1626, %v1625
  %1628 = vmatprep.subr.bf16.mxu0 0
  %1629 = vmatpush1.bf16.msra.mxu0 0
  %1630 = vmatprep.subr.bf16.mxu0 0
  %1631 = vmatpush1.bf16.msra.mxu0 0
  %1632 = vmatprep.subr.bf16.mxu0 0
  %1633 = vmatpush1.bf16.msra.mxu0 0
  %1634 = vmatprep.subr.bf16.mxu0 0
  %1635 = vmatpush1.bf16.msra.mxu0 0
  %1636 = vmatprep.subr.bf16.mxu0 0
  %1637 = vmatpush1.bf16.msra.mxu0 0
  %1638 = vmatprep.subr.bf16.mxu0 0
  %1639 = vmatpush1.bf16.msra.mxu0 0
  %1640 = vmatprep.subr.bf16.mxu0 0
  %1641 = vmatpush1.bf16.msra.mxu0 0
  %1642 = vmatprep.subr.bf16.mxu0 0
  %1643 = vmatpush1.bf16.msra.mxu0 %v1627
  %1644 = vmatprep.subr.bf16.mxu0 0
  %1645 = vmatpush2.bf16.msra.mxu0 0
  %1646 = vmatprep.subr.bf16.mxu0 0
  %1647 = vmatpush2.bf16.msra.mxu0 0
  %1648 = vmatprep.subr.bf16.mxu0 0
  %1649 = vmatpush2.bf16.msra.mxu0 0
  %1650 = vmatprep.subr.bf16.mxu0 0
  %1651 = vmatpush2.bf16.msra.mxu0 0
  %1652 = vmatprep.subr.bf16.mxu0 0
  %1653 = vmatpush2.bf16.msra.mxu0 0
  %1654 = vmatprep.subr.bf16.mxu0 0
  %1655 = vmatpush2.bf16.msra.mxu0 0
  %1656 = vmatprep.subr.bf16.mxu0 0
  %1657 = vmatpush2.bf16.msra.mxu0 0
  %1658 = vmatprep.subr.bf16.mxu0 0
  %1659 = vmatpush2.bf16.msra.mxu0 0
  %1660 = vmatprep.mubr.bf16.mxu0 0
  %1661 = vmatmul.mubr.bf16.gmra.mxu0 %v602
  %v1662 = vpop.f32.mrf.mxu0
  %v1663 = vadd.f32 %v543, %v1662
  %v1664 = vpop.f32.mrf.mxu0
  %v1665 = vpop.f32.mrf.mxu0
  %v1666 = vadd.f32 %v548, %v1665
  %v1667 = vpop.f32.mrf.mxu0
  %1668 = vmatprep.mubr.bf16.mxu0 0
  %1669 = vmatmul.mubr.bf16.gmra.mxu0 %v605
  %v1670 = vpop.f32.mrf.mxu0
  %v1671 = vadd.f32 %v553, %v1670
  %v1672 = vpop.f32.mrf.mxu0
  %v1673 = vpop.f32.mrf.mxu0
  %v1674 = vadd.f32 %v558, %v1673
  %v1675 = vpop.f32.mrf.mxu0
  %1676 = vmatprep.mubr.bf16.mxu0 0
  %1677 = vmatmul.mubr.bf16.gmra.mxu0 %v608
  %v1678 = vpop.f32.mrf.mxu0
  %v1679 = vadd.f32 %v563, %v1678
  %v1680 = vpop.f32.mrf.mxu0
  %v1681 = vpop.f32.mrf.mxu0
  %v1682 = vadd.f32 %v568, %v1681
  %v1683 = vpop.f32.mrf.mxu0
  %1684 = vmatprep.mubr.bf16.mxu0 0
  %1685 = vmatmul.mubr.bf16.gmra.mxu0 %v611
  %v1686 = vpop.f32.mrf.mxu0
  %v1687 = vadd.f32 %v573, %v1686
  %v1688 = vpop.f32.mrf.mxu0
  %v1689 = vpop.f32.mrf.mxu0
  %v1690 = vadd.f32 %v578, %v1689
  %v1691 = vpop.f32.mrf.mxu0
  %1692 = vdwg.mxu0
  %v1693 = vsel %vm678, %v1663, 0.0
  %1694 = vadd.xlane.f32.xlu0 %v1693
  %v1695 = vpop.xlane.xlu0 %1694
  %v1696 = vsel %vm678, %v1666, 0.0
  %1697 = vadd.xlane.f32.xlu0 %v1696
  %v1698 = vpop.xlane.xlu0 %1697
  %v1699 = vsel %vm678, %v1671, 0.0
  %1700 = vadd.xlane.f32.xlu0 %v1699
  %v1701 = vpop.xlane.xlu0 %1700
  %v1702 = vsel %vm678, %v1674, 0.0
  %1703 = vadd.xlane.f32.xlu0 %v1702
  %v1704 = vpop.xlane.xlu0 %1703
  %v1705 = vsel %vm678, %v1679, 0.0
  %1706 = vadd.xlane.f32.xlu0 %v1705
  %v1707 = vpop.xlane.xlu0 %1706
  %v1708 = vsel %vm678, %v1682, 0.0
  %1709 = vadd.xlane.f32.xlu0 %v1708
  %v1710 = vpop.xlane.xlu0 %1709
  %v1711 = vsel %vm678, %v1687, 0.0
  %1712 = vadd.xlane.f32.xlu0 %v1711
  %v1713 = vpop.xlane.xlu0 %1712
  %v1714 = vsel %vm678, %v1690, 0.0
  %1715 = vadd.xlane.f32.xlu0 %v1714
  %v1716 = vpop.xlane.xlu0 %1715
  %v1717 = vmul.f32 %v1695, %v703
  %v1718 = vmul.f32 %v1698, %v703
  %v1719 = vmul.f32 %v1701, %v703
  %v1720 = vmul.f32 %v1704, %v703
  %v1721 = vmul.f32 %v1707, %v703
  %v1722 = vmul.f32 %v1710, %v703
  %v1723 = vmul.f32 %v1713, %v703
  %v1724 = vmul.f32 %v1716, %v703
  %v1725 = vld [vmem:[%s11] sm:$0xf]
  %v1726 = vld [vmem:[%s11 + $0x4] sm:$0xf]
  %v1727 = vld [vmem:[%s12] sm:$0xff]
  %v1728 = vld [vmem:[%s12 + $0x8] sm:$0xff]
  %v1729 = vld [vmem:[%s13] sm:$0xf]
  %v1730 = vld [vmem:[%s13 + $0x4] sm:$0xf]
  %v1731 = vld [vmem:[%s13 + $0x8] sm:$0xf]
  %v1732 = vld [vmem:[%s13 + $0xc] sm:$0xf]
  %v1733 = vld [vmem:[%s13 + $0x10] sm:$0xf]
  %v1734 = vld [vmem:[%s13 + $0x14] sm:$0xf]
  %v1735 = vld [vmem:[%s13 + $0x18] sm:$0xf]
  %v1736 = vld [vmem:[%s13 + $0x1c] sm:$0xf]
  %v1737 = vld [vmem:[%s14] sm:$0xff]
  %v1738 = vld [vmem:[%s14 + $0x8] sm:$0xff]
  %v1739 = vld [vmem:[%s14 + $0x10] sm:$0xff]
  %v1740 = vld [vmem:[%s14 + $0x18] sm:$0xff]
  %v1741 = vld [vmem:[%s14 + $0x20] sm:$0xff]
  %v1742 = vld [vmem:[%s14 + $0x28] sm:$0xff]
  %v1743 = vld [vmem:[%s14 + $0x30] sm:$0xff]
  %v1744 = vld [vmem:[%s14 + $0x38] sm:$0xff]
  %v1745 = vpack.c.bf16 %v1342, %v1338
  %v1746 = vpack.c.bf16 %v1343, %v1339
  %v1747 = vpack.c.bf16 %v1344, %v1340
  %v1748 = vpack.c.bf16 %v1345, %v1341
  %v1749 = vpack.c.bf16 %v1350, %v1346
  %v1750 = vpack.c.bf16 %v1351, %v1347
  %v1751 = vpack.c.bf16 %v1352, %v1348
  %v1752 = vpack.c.bf16 %v1353, %v1349
  %v1753 = vpack.c.bf16 %v1358, %v1354
  %v1754 = vpack.c.bf16 %v1359, %v1355
  %v1755 = vpack.c.bf16 %v1360, %v1356
  %v1756 = vpack.c.bf16 %v1361, %v1357
  %v1757 = vpack.c.bf16 %v1366, %v1362
  %v1758 = vpack.c.bf16 %v1367, %v1363
  %v1759 = vpack.c.bf16 %v1368, %v1364
  %v1760 = vpack.c.bf16 %v1369, %v1365
  %1762 = vset.pattern.permute.xlu0 0
  %1763 = vperm.xlu0 %1762, %v1727
  %v1764 = vpop.permute.xlu0 %1763
  %1767 = vset.pattern.permute.xlu0 0
  %1768 = vperm.xlu0 %1767, %v1728
  %v1769 = vpop.permute.xlu0 %1768
  %v1773 = vunpack.c.l.b16 %v1725
  %v1774 = vunpack.c.l.b16 %v1726
  %v1775 = vpack.c.b16 %v1774, %v1773
  %v1777 = vsel %vm492, %v1775, 0
  %1779 = vmatprep.subr.bf16.mxu0 0
  %1780 = vmatpush1.bf16.msra.mxu0 0
  %1781 = vmatprep.subr.bf16.mxu0 0
  %1782 = vmatpush1.bf16.msra.mxu0 0
  %1783 = vmatprep.subr.bf16.mxu0 0
  %1784 = vmatpush1.bf16.msra.mxu0 0
  %1785 = vmatprep.subr.bf16.mxu0 0
  %1786 = vmatpush1.bf16.msra.mxu0 0
  %1787 = vmatprep.subr.bf16.mxu0 %v1758
  %1788 = vmatpush1.bf16.msra.mxu0 %v1757
  %1789 = vmatprep.subr.bf16.mxu0 %v1754
  %1790 = vmatpush1.bf16.msra.mxu0 %v1753
  %1791 = vmatprep.subr.bf16.mxu0 %v1750
  %1792 = vmatpush1.bf16.msra.mxu0 %v1749
  %1793 = vmatprep.subr.bf16.mxu0 %v1746
  %1794 = vmatpush1.bf16.msra.mxu0 %v1745
  %1795 = vmatprep.subr.bf16.mxu0 0
  %1796 = vmatpush2.bf16.msra.mxu0 0
  %1797 = vmatprep.subr.bf16.mxu0 0
  %1798 = vmatpush2.bf16.msra.mxu0 0
  %1799 = vmatprep.subr.bf16.mxu0 0
  %1800 = vmatpush2.bf16.msra.mxu0 0
  %1801 = vmatprep.subr.bf16.mxu0 0
  %1802 = vmatpush2.bf16.msra.mxu0 0
  %1803 = vmatprep.subr.bf16.mxu0 0
  %1804 = vmatpush2.bf16.msra.mxu0 0
  %1805 = vmatprep.subr.bf16.mxu0 0
  %1806 = vmatpush2.bf16.msra.mxu0 0
  %1807 = vmatprep.subr.bf16.mxu0 0
  %1808 = vmatpush2.bf16.msra.mxu0 0
  %1809 = vmatprep.subr.bf16.mxu0 0
  %1810 = vmatpush2.bf16.msra.mxu0 0
  %1811 = vmatprep.mubr.bf16.mxu0 0
  %1812 = vmatmul.mubr.bf16.gmra.mxu0 %v1777
  %v1813 = vpop.f32.mrf.mxu0
  %v1814 = vadd.f32 %v1764, %v1813
  %v1815 = vpop.f32.mrf.mxu0
  %v1816 = vadd.f32 %v1764, %v1815
  %v1817 = vpop.f32.mrf.mxu0
  %v1818 = vadd.f32 %v1769, %v1817
  %v1819 = vpop.f32.mrf.mxu0
  %v1820 = vadd.f32 %v1769, %v1819
  %1821 = vdwg.mxu0
  %1822 = vmatprep.subr.bf16.mxu0 0
  %1823 = vmatpush1.bf16.msra.mxu0 0
  %1824 = vmatprep.subr.bf16.mxu0 0
  %1825 = vmatpush1.bf16.msra.mxu0 0
  %1826 = vmatprep.subr.bf16.mxu0 0
  %1827 = vmatpush1.bf16.msra.mxu0 0
  %1828 = vmatprep.subr.bf16.mxu0 0
  %1829 = vmatpush1.bf16.msra.mxu0 0
  %1830 = vmatprep.subr.bf16.mxu0 %v1760
  %1831 = vmatpush1.bf16.msra.mxu0 %v1759
  %1832 = vmatprep.subr.bf16.mxu0 %v1756
  %1833 = vmatpush1.bf16.msra.mxu0 %v1755
  %1834 = vmatprep.subr.bf16.mxu0 %v1752
  %1835 = vmatpush1.bf16.msra.mxu0 %v1751
  %1836 = vmatprep.subr.bf16.mxu0 %v1748
  %1837 = vmatpush1.bf16.msra.mxu0 %v1747
  %1838 = vmatprep.subr.bf16.mxu0 0
  %1839 = vmatpush2.bf16.msra.mxu0 0
  %1840 = vmatprep.subr.bf16.mxu0 0
  %1841 = vmatpush2.bf16.msra.mxu0 0
  %1842 = vmatprep.subr.bf16.mxu0 0
  %1843 = vmatpush2.bf16.msra.mxu0 0
  %1844 = vmatprep.subr.bf16.mxu0 0
  %1845 = vmatpush2.bf16.msra.mxu0 0
  %1846 = vmatprep.subr.bf16.mxu0 0
  %1847 = vmatpush2.bf16.msra.mxu0 0
  %1848 = vmatprep.subr.bf16.mxu0 0
  %1849 = vmatpush2.bf16.msra.mxu0 0
  %1850 = vmatprep.subr.bf16.mxu0 0
  %1851 = vmatpush2.bf16.msra.mxu0 0
  %1852 = vmatprep.subr.bf16.mxu0 0
  %1853 = vmatpush2.bf16.msra.mxu0 0
  %1854 = vmatprep.mubr.bf16.mxu0 0
  %1855 = vmatmul.mubr.bf16.gmra.mxu0 %v1777
  %v1856 = vpop.f32.mrf.mxu0
  %v1857 = vadd.f32 %v1764, %v1856
  %v1858 = vpop.f32.mrf.mxu0
  %v1859 = vadd.f32 %v1764, %v1858
  %v1860 = vpop.f32.mrf.mxu0
  %v1861 = vadd.f32 %v1769, %v1860
  %v1862 = vpop.f32.mrf.mxu0
  %v1863 = vadd.f32 %v1769, %v1862
  %1864 = vdwg.mxu0
  %v1865 = vmax.f32 %v1814, 0.0
  %v1866 = vmax.f32 %v1816, 0.0
  %v1867 = vmax.f32 %v1857, 0.0
  %v1868 = vmax.f32 %v1859, 0.0
  %v1869 = vmax.f32 %v1818, 0.0
  %v1870 = vmax.f32 %v1820, 0.0
  %v1871 = vmax.f32 %v1861, 0.0
  %v1872 = vmax.f32 %v1863, 0.0
  %v1873 = vpack.c.bf16 %v1869, %v1865
  %v1874 = vpack.c.bf16 %v1870, %v1866
  %v1875 = vpack.c.bf16 %v1871, %v1867
  %v1876 = vpack.c.bf16 %v1872, %v1868
  %1878 = vset.pattern.permute.xlu0 0
  %1879 = vperm.xlu0 %1878, %v1737
  %v1880 = vpop.permute.xlu0 %1879
  %1883 = vset.pattern.permute.xlu0 0
  %1884 = vperm.xlu0 %1883, %v1738
  %v1885 = vpop.permute.xlu0 %1884
  %1888 = vset.pattern.permute.xlu0 0
  %1889 = vperm.xlu0 %1888, %v1739
  %v1890 = vpop.permute.xlu0 %1889
  %1893 = vset.pattern.permute.xlu0 0
  %1894 = vperm.xlu0 %1893, %v1740
  %v1895 = vpop.permute.xlu0 %1894
  %1898 = vset.pattern.permute.xlu0 0
  %1899 = vperm.xlu0 %1898, %v1741
  %v1900 = vpop.permute.xlu0 %1899
  %1903 = vset.pattern.permute.xlu0 0
  %1904 = vperm.xlu0 %1903, %v1742
  %v1905 = vpop.permute.xlu0 %1904
  %1908 = vset.pattern.permute.xlu0 0
  %1909 = vperm.xlu0 %1908, %v1743
  %v1910 = vpop.permute.xlu0 %1909
  %1913 = vset.pattern.permute.xlu0 0
  %1914 = vperm.xlu0 %1913, %v1744
  %v1915 = vpop.permute.xlu0 %1914
  %v1925 = vunpack.c.l.b16 %v1729
  %v1926 = vunpack.c.l.b16 %v1730
  %v1927 = vunpack.c.l.b16 %v1731
  %v1928 = vunpack.c.l.b16 %v1732
  %v1929 = vunpack.c.l.b16 %v1733
  %v1930 = vunpack.c.l.b16 %v1734
  %v1931 = vunpack.c.l.b16 %v1735
  %v1932 = vunpack.c.l.b16 %v1736
  %v1933 = vpack.c.b16 %v1926, %v1925
  %v1934 = vpack.c.b16 %v1928, %v1927
  %v1935 = vpack.c.b16 %v1930, %v1929
  %v1936 = vpack.c.b16 %v1932, %v1931
  %v1938 = vsel %vm600, %v1933, 0
  %v1941 = vsel %vm600, %v1934, 0
  %v1944 = vsel %vm600, %v1935, 0
  %v1947 = vsel %vm600, %v1936, 0
  %1949 = vmatprep.subr.bf16.mxu0 0
  %1950 = vmatpush1.bf16.msra.mxu0 0
  %1951 = vmatprep.subr.bf16.mxu0 0
  %1952 = vmatpush1.bf16.msra.mxu0 0
  %1953 = vmatprep.subr.bf16.mxu0 0
  %1954 = vmatpush1.bf16.msra.mxu0 0
  %1955 = vmatprep.subr.bf16.mxu0 0
  %1956 = vmatpush1.bf16.msra.mxu0 0
  %1957 = vmatprep.subr.bf16.mxu0 0
  %1958 = vmatpush1.bf16.msra.mxu0 0
  %1959 = vmatprep.subr.bf16.mxu0 0
  %1960 = vmatpush1.bf16.msra.mxu0 0
  %1961 = vmatprep.subr.bf16.mxu0 0
  %1962 = vmatpush1.bf16.msra.mxu0 0
  %1963 = vmatprep.subr.bf16.mxu0 %v1874
  %1964 = vmatpush1.bf16.msra.mxu0 %v1873
  %1965 = vmatprep.subr.bf16.mxu0 0
  %1966 = vmatpush2.bf16.msra.mxu0 0
  %1967 = vmatprep.subr.bf16.mxu0 0
  %1968 = vmatpush2.bf16.msra.mxu0 0
  %1969 = vmatprep.subr.bf16.mxu0 0
  %1970 = vmatpush2.bf16.msra.mxu0 0
  %1971 = vmatprep.subr.bf16.mxu0 0
  %1972 = vmatpush2.bf16.msra.mxu0 0
  %1973 = vmatprep.subr.bf16.mxu0 0
  %1974 = vmatpush2.bf16.msra.mxu0 0
  %1975 = vmatprep.subr.bf16.mxu0 0
  %1976 = vmatpush2.bf16.msra.mxu0 0
  %1977 = vmatprep.subr.bf16.mxu0 0
  %1978 = vmatpush2.bf16.msra.mxu0 0
  %1979 = vmatprep.subr.bf16.mxu0 0
  %1980 = vmatpush2.bf16.msra.mxu0 0
  %1981 = vmatprep.mubr.bf16.mxu0 0
  %1982 = vmatmul.mubr.bf16.gmra.mxu0 %v1938
  %v1983 = vpop.f32.mrf.mxu0
  %v1984 = vadd.f32 %v1880, %v1983
  %v1985 = vpop.f32.mrf.mxu0
  %v1986 = vadd.f32 %v1880, %v1985
  %v1987 = vpop.f32.mrf.mxu0
  %v1988 = vadd.f32 %v1885, %v1987
  %v1989 = vpop.f32.mrf.mxu0
  %v1990 = vadd.f32 %v1885, %v1989
  %1991 = vmatprep.mubr.bf16.mxu0 0
  %1992 = vmatmul.mubr.bf16.gmra.mxu0 %v1941
  %v1993 = vpop.f32.mrf.mxu0
  %v1994 = vadd.f32 %v1890, %v1993
  %v1995 = vpop.f32.mrf.mxu0
  %v1996 = vadd.f32 %v1890, %v1995
  %v1997 = vpop.f32.mrf.mxu0
  %v1998 = vadd.f32 %v1895, %v1997
  %v1999 = vpop.f32.mrf.mxu0
  %v2000 = vadd.f32 %v1895, %v1999
  %2001 = vmatprep.mubr.bf16.mxu0 0
  %2002 = vmatmul.mubr.bf16.gmra.mxu0 %v1944
  %v2003 = vpop.f32.mrf.mxu0
  %v2004 = vadd.f32 %v1900, %v2003
  %v2005 = vpop.f32.mrf.mxu0
  %v2006 = vadd.f32 %v1900, %v2005
  %v2007 = vpop.f32.mrf.mxu0
  %v2008 = vadd.f32 %v1905, %v2007
  %v2009 = vpop.f32.mrf.mxu0
  %v2010 = vadd.f32 %v1905, %v2009
  %2011 = vmatprep.mubr.bf16.mxu0 0
  %2012 = vmatmul.mubr.bf16.gmra.mxu0 %v1947
  %v2013 = vpop.f32.mrf.mxu0
  %v2014 = vadd.f32 %v1910, %v2013
  %v2015 = vpop.f32.mrf.mxu0
  %v2016 = vadd.f32 %v1910, %v2015
  %v2017 = vpop.f32.mrf.mxu0
  %v2018 = vadd.f32 %v1915, %v2017
  %v2019 = vpop.f32.mrf.mxu0
  %v2020 = vadd.f32 %v1915, %v2019
  %2021 = vdwg.mxu0
  %2022 = vmatprep.subr.bf16.mxu0 0
  %2023 = vmatpush1.bf16.msra.mxu0 0
  %2024 = vmatprep.subr.bf16.mxu0 0
  %2025 = vmatpush1.bf16.msra.mxu0 0
  %2026 = vmatprep.subr.bf16.mxu0 0
  %2027 = vmatpush1.bf16.msra.mxu0 0
  %2028 = vmatprep.subr.bf16.mxu0 0
  %2029 = vmatpush1.bf16.msra.mxu0 0
  %2030 = vmatprep.subr.bf16.mxu0 0
  %2031 = vmatpush1.bf16.msra.mxu0 0
  %2032 = vmatprep.subr.bf16.mxu0 0
  %2033 = vmatpush1.bf16.msra.mxu0 0
  %2034 = vmatprep.subr.bf16.mxu0 0
  %2035 = vmatpush1.bf16.msra.mxu0 0
  %2036 = vmatprep.subr.bf16.mxu0 %v1876
  %2037 = vmatpush1.bf16.msra.mxu0 %v1875
  %2038 = vmatprep.subr.bf16.mxu0 0
  %2039 = vmatpush2.bf16.msra.mxu0 0
  %2040 = vmatprep.subr.bf16.mxu0 0
  %2041 = vmatpush2.bf16.msra.mxu0 0
  %2042 = vmatprep.subr.bf16.mxu0 0
  %2043 = vmatpush2.bf16.msra.mxu0 0
  %2044 = vmatprep.subr.bf16.mxu0 0
  %2045 = vmatpush2.bf16.msra.mxu0 0
  %2046 = vmatprep.subr.bf16.mxu0 0
  %2047 = vmatpush2.bf16.msra.mxu0 0
  %2048 = vmatprep.subr.bf16.mxu0 0
  %2049 = vmatpush2.bf16.msra.mxu0 0
  %2050 = vmatprep.subr.bf16.mxu0 0
  %2051 = vmatpush2.bf16.msra.mxu0 0
  %2052 = vmatprep.subr.bf16.mxu0 0
  %2053 = vmatpush2.bf16.msra.mxu0 0
  %2054 = vmatprep.mubr.bf16.mxu0 0
  %2055 = vmatmul.mubr.bf16.gmra.mxu0 %v1938
  %v2056 = vpop.f32.mrf.mxu0
  %v2057 = vadd.f32 %v1880, %v2056
  %v2058 = vpop.f32.mrf.mxu0
  %v2059 = vadd.f32 %v1880, %v2058
  %v2060 = vpop.f32.mrf.mxu0
  %v2061 = vadd.f32 %v1885, %v2060
  %v2062 = vpop.f32.mrf.mxu0
  %v2063 = vadd.f32 %v1885, %v2062
  %2064 = vmatprep.mubr.bf16.mxu0 0
  %2065 = vmatmul.mubr.bf16.gmra.mxu0 %v1941
  %v2066 = vpop.f32.mrf.mxu0
  %v2067 = vadd.f32 %v1890, %v2066
  %v2068 = vpop.f32.mrf.mxu0
  %v2069 = vadd.f32 %v1890, %v2068
  %v2070 = vpop.f32.mrf.mxu0
  %v2071 = vadd.f32 %v1895, %v2070
  %v2072 = vpop.f32.mrf.mxu0
  %v2073 = vadd.f32 %v1895, %v2072
  %2074 = vmatprep.mubr.bf16.mxu0 0
  %2075 = vmatmul.mubr.bf16.gmra.mxu0 %v1944
  %v2076 = vpop.f32.mrf.mxu0
  %v2077 = vadd.f32 %v1900, %v2076
  %v2078 = vpop.f32.mrf.mxu0
  %v2079 = vadd.f32 %v1900, %v2078
  %v2080 = vpop.f32.mrf.mxu0
  %v2081 = vadd.f32 %v1905, %v2080
  %v2082 = vpop.f32.mrf.mxu0
  %v2083 = vadd.f32 %v1905, %v2082
  %2084 = vmatprep.mubr.bf16.mxu0 0
  %2085 = vmatmul.mubr.bf16.gmra.mxu0 %v1947
  %v2086 = vpop.f32.mrf.mxu0
  %v2087 = vadd.f32 %v1910, %v2086
  %v2088 = vpop.f32.mrf.mxu0
  %v2089 = vadd.f32 %v1910, %v2088
  %v2090 = vpop.f32.mrf.mxu0
  %v2091 = vadd.f32 %v1915, %v2090
  %v2092 = vpop.f32.mrf.mxu0
  %v2093 = vadd.f32 %v1915, %v2092
  %2094 = vdwg.mxu0
  %v2095 = vadd.f32 %v1984, %v1717
  %v2096 = vadd.f32 %v1986, %v1717
  %v2097 = vadd.f32 %v2057, %v1717
  %v2098 = vadd.f32 %v2059, %v1717
  %v2099 = vadd.f32 %v1988, %v1718
  %v2100 = vadd.f32 %v1990, %v1718
  %v2101 = vadd.f32 %v2061, %v1718
  %v2102 = vadd.f32 %v2063, %v1718
  %v2103 = vadd.f32 %v1994, %v1719
  %v2104 = vadd.f32 %v1996, %v1719
  %v2105 = vadd.f32 %v2067, %v1719
  %v2106 = vadd.f32 %v2069, %v1719
  %v2107 = vadd.f32 %v1998, %v1720
  %v2108 = vadd.f32 %v2000, %v1720
  %v2109 = vadd.f32 %v2071, %v1720
  %v2110 = vadd.f32 %v2073, %v1720
  %v2111 = vadd.f32 %v2004, %v1721
  %v2112 = vadd.f32 %v2006, %v1721
  %v2113 = vadd.f32 %v2077, %v1721
  %v2114 = vadd.f32 %v2079, %v1721
  %v2115 = vadd.f32 %v2008, %v1722
  %v2116 = vadd.f32 %v2010, %v1722
  %v2117 = vadd.f32 %v2081, %v1722
  %v2118 = vadd.f32 %v2083, %v1722
  %v2119 = vadd.f32 %v2014, %v1723
  %v2120 = vadd.f32 %v2016, %v1723
  %v2121 = vadd.f32 %v2087, %v1723
  %v2122 = vadd.f32 %v2089, %v1723
  %v2123 = vadd.f32 %v2018, %v1724
  %v2124 = vadd.f32 %v2020, %v1724
  %v2125 = vadd.f32 %v2091, %v1724
  %v2126 = vadd.f32 %v2093, %v1724
  %v2127 = vxor.u32 %v2095, 2147483648
  %v2128 = vxor.u32 %v2096, 2147483648
  %v2129 = vxor.u32 %v2097, 2147483648
  %v2130 = vxor.u32 %v2098, 2147483648
  %v2131 = vxor.u32 %v2099, 2147483648
  %v2132 = vxor.u32 %v2100, 2147483648
  %v2133 = vxor.u32 %v2101, 2147483648
  %v2134 = vxor.u32 %v2102, 2147483648
  %v2135 = vxor.u32 %v2103, 2147483648
  %v2136 = vxor.u32 %v2104, 2147483648
  %v2137 = vxor.u32 %v2105, 2147483648
  %v2138 = vxor.u32 %v2106, 2147483648
  %v2139 = vxor.u32 %v2107, 2147483648
  %v2140 = vxor.u32 %v2108, 2147483648
  %v2141 = vxor.u32 %v2109, 2147483648
  %v2142 = vxor.u32 %v2110, 2147483648
  %v2143 = vxor.u32 %v2111, 2147483648
  %v2144 = vxor.u32 %v2112, 2147483648
  %v2145 = vxor.u32 %v2113, 2147483648
  %v2146 = vxor.u32 %v2114, 2147483648
  %v2147 = vxor.u32 %v2115, 2147483648
  %v2148 = vxor.u32 %v2116, 2147483648
  %v2149 = vxor.u32 %v2117, 2147483648
  %v2150 = vxor.u32 %v2118, 2147483648
  %v2151 = vxor.u32 %v2119, 2147483648
  %v2152 = vxor.u32 %v2120, 2147483648
  %v2153 = vxor.u32 %v2121, 2147483648
  %v2154 = vxor.u32 %v2122, 2147483648
  %v2155 = vxor.u32 %v2123, 2147483648
  %v2156 = vxor.u32 %v2124, 2147483648
  %v2157 = vxor.u32 %v2125, 2147483648
  %v2158 = vxor.u32 %v2126, 2147483648
  %v2159 = vmul.f32 %v2127, 1.442695
  %v2160 = vpow.pop %v2159
  %v2161 = vmul.f32 %v2128, 1.442695
  %v2162 = vpow.pop %v2161
  %v2163 = vmul.f32 %v2129, 1.442695
  %v2164 = vpow.pop %v2163
  %v2165 = vmul.f32 %v2130, 1.442695
  %v2166 = vpow.pop %v2165
  %v2167 = vmul.f32 %v2131, 1.442695
  %v2168 = vpow.pop %v2167
  %v2169 = vmul.f32 %v2132, 1.442695
  %v2170 = vpow.pop %v2169
  %v2171 = vmul.f32 %v2133, 1.442695
  %v2172 = vpow.pop %v2171
  %v2173 = vmul.f32 %v2134, 1.442695
  %v2174 = vpow.pop %v2173
  %v2175 = vmul.f32 %v2135, 1.442695
  %v2176 = vpow.pop %v2175
  %v2177 = vmul.f32 %v2136, 1.442695
  %v2178 = vpow.pop %v2177
  %v2179 = vmul.f32 %v2137, 1.442695
  %v2180 = vpow.pop %v2179
  %v2181 = vmul.f32 %v2138, 1.442695
  %v2182 = vpow.pop %v2181
  %v2183 = vmul.f32 %v2139, 1.442695
  %v2184 = vpow.pop %v2183
  %v2185 = vmul.f32 %v2140, 1.442695
  %v2186 = vpow.pop %v2185
  %v2187 = vmul.f32 %v2141, 1.442695
  %v2188 = vpow.pop %v2187
  %v2189 = vmul.f32 %v2142, 1.442695
  %v2190 = vpow.pop %v2189
  %v2191 = vmul.f32 %v2143, 1.442695
  %v2192 = vpow.pop %v2191
  %v2193 = vmul.f32 %v2144, 1.442695
  %v2194 = vpow.pop %v2193
  %v2195 = vmul.f32 %v2145, 1.442695
  %v2196 = vpow.pop %v2195
  %v2197 = vmul.f32 %v2146, 1.442695
  %v2198 = vpow.pop %v2197
  %v2199 = vmul.f32 %v2147, 1.442695
  %v2200 = vpow.pop %v2199
  %v2201 = vmul.f32 %v2148, 1.442695
  %v2202 = vpow.pop %v2201
  %v2203 = vmul.f32 %v2149, 1.442695
  %v2204 = vpow.pop %v2203
  %v2205 = vmul.f32 %v2150, 1.442695
  %v2206 = vpow.pop %v2205
  %v2207 = vmul.f32 %v2151, 1.442695
  %v2208 = vpow.pop %v2207
  %v2209 = vmul.f32 %v2152, 1.442695
  %v2210 = vpow.pop %v2209
  %v2211 = vmul.f32 %v2153, 1.442695
  %v2212 = vpow.pop %v2211
  %v2213 = vmul.f32 %v2154, 1.442695
  %v2214 = vpow.pop %v2213
  %v2215 = vmul.f32 %v2155, 1.442695
  %v2216 = vpow.pop %v2215
  %v2217 = vmul.f32 %v2156, 1.442695
  %v2218 = vpow.pop %v2217
  %v2219 = vmul.f32 %v2157, 1.442695
  %v2220 = vpow.pop %v2219
  %v2221 = vmul.f32 %v2158, 1.442695
  %v2222 = vpow.pop %v2221
  %v2223 = vadd.f32 %v2160, 1.0
  %v2224 = vadd.f32 %v2162, 1.0
  %v2225 = vadd.f32 %v2164, 1.0
  %v2226 = vadd.f32 %v2166, 1.0
  %v2227 = vadd.f32 %v2168, 1.0
  %v2228 = vadd.f32 %v2170, 1.0
  %v2229 = vadd.f32 %v2172, 1.0
  %v2230 = vadd.f32 %v2174, 1.0
  %v2231 = vadd.f32 %v2176, 1.0
  %v2232 = vadd.f32 %v2178, 1.0
  %v2233 = vadd.f32 %v2180, 1.0
  %v2234 = vadd.f32 %v2182, 1.0
  %v2235 = vadd.f32 %v2184, 1.0
  %v2236 = vadd.f32 %v2186, 1.0
  %v2237 = vadd.f32 %v2188, 1.0
  %v2238 = vadd.f32 %v2190, 1.0
  %v2239 = vadd.f32 %v2192, 1.0
  %v2240 = vadd.f32 %v2194, 1.0
  %v2241 = vadd.f32 %v2196, 1.0
  %v2242 = vadd.f32 %v2198, 1.0
  %v2243 = vadd.f32 %v2200, 1.0
  %v2244 = vadd.f32 %v2202, 1.0
  %v2245 = vadd.f32 %v2204, 1.0
  %v2246 = vadd.f32 %v2206, 1.0
  %v2247 = vadd.f32 %v2208, 1.0
  %v2248 = vadd.f32 %v2210, 1.0
  %v2249 = vadd.f32 %v2212, 1.0
  %v2250 = vadd.f32 %v2214, 1.0
  %v2251 = vadd.f32 %v2216, 1.0
  %v2252 = vadd.f32 %v2218, 1.0
  %v2253 = vadd.f32 %v2220, 1.0
  %v2254 = vadd.f32 %v2222, 1.0
  %v2255 = vrcp.pop %v2223
  %v2256 = vmul.f32 1.0, %v2255
  %v2257 = vrcp.pop %v2224
  %v2258 = vmul.f32 1.0, %v2257
  %v2259 = vrcp.pop %v2225
  %v2260 = vmul.f32 1.0, %v2259
  %v2261 = vrcp.pop %v2226
  %v2262 = vmul.f32 1.0, %v2261
  %v2263 = vrcp.pop %v2227
  %v2264 = vmul.f32 1.0, %v2263
  %v2265 = vrcp.pop %v2228
  %v2266 = vmul.f32 1.0, %v2265
  %v2267 = vrcp.pop %v2229
  %v2268 = vmul.f32 1.0, %v2267
  %v2269 = vrcp.pop %v2230
  %v2270 = vmul.f32 1.0, %v2269
  %v2271 = vrcp.pop %v2231
  %v2272 = vmul.f32 1.0, %v2271
  %v2273 = vrcp.pop %v2232
  %v2274 = vmul.f32 1.0, %v2273
  %v2275 = vrcp.pop %v2233
  %v2276 = vmul.f32 1.0, %v2275
  %v2277 = vrcp.pop %v2234
  %v2278 = vmul.f32 1.0, %v2277
  %v2279 = vrcp.pop %v2235
  %v2280 = vmul.f32 1.0, %v2279
  %v2281 = vrcp.pop %v2236
  %v2282 = vmul.f32 1.0, %v2281
  %v2283 = vrcp.pop %v2237
  %v2284 = vmul.f32 1.0, %v2283
  %v2285 = vrcp.pop %v2238
  %v2286 = vmul.f32 1.0, %v2285
  %v2287 = vrcp.pop %v2239
  %v2288 = vmul.f32 1.0, %v2287
  %v2289 = vrcp.pop %v2240
  %v2290 = vmul.f32 1.0, %v2289
  %v2291 = vrcp.pop %v2241
  %v2292 = vmul.f32 1.0, %v2291
  %v2293 = vrcp.pop %v2242
  %v2294 = vmul.f32 1.0, %v2293
  %v2295 = vrcp.pop %v2243
  %v2296 = vmul.f32 1.0, %v2295
  %v2297 = vrcp.pop %v2244
  %v2298 = vmul.f32 1.0, %v2297
  %v2299 = vrcp.pop %v2245
  %v2300 = vmul.f32 1.0, %v2299
  %v2301 = vrcp.pop %v2246
  %v2302 = vmul.f32 1.0, %v2301
  %v2303 = vrcp.pop %v2247
  %v2304 = vmul.f32 1.0, %v2303
  %v2305 = vrcp.pop %v2248
  %v2306 = vmul.f32 1.0, %v2305
  %v2307 = vrcp.pop %v2249
  %v2308 = vmul.f32 1.0, %v2307
  %v2309 = vrcp.pop %v2250
  %v2310 = vmul.f32 1.0, %v2309
  %v2311 = vrcp.pop %v2251
  %v2312 = vmul.f32 1.0, %v2311
  %v2313 = vrcp.pop %v2252
  %v2314 = vmul.f32 1.0, %v2313
  %v2315 = vrcp.pop %v2253
  %v2316 = vmul.f32 1.0, %v2315
  %v2317 = vrcp.pop %v2254
  %v2318 = vmul.f32 1.0, %v2317
  %v2319 = vmul.f32 %v179, %v2256
  %v2320 = vmul.f32 %v180, %v2258
  %v2321 = vmul.f32 %v181, %v2260
  %v2322 = vmul.f32 %v182, %v2262
  %v2323 = vmul.f32 %v183, %v2264
  %v2324 = vmul.f32 %v184, %v2266
  %v2325 = vmul.f32 %v185, %v2268
  %v2326 = vmul.f32 %v186, %v2270
  %v2327 = vmul.f32 %v187, %v2272
  %v2328 = vmul.f32 %v188, %v2274
  %v2329 = vmul.f32 %v189, %v2276
  %v2330 = vmul.f32 %v190, %v2278
  %v2331 = vmul.f32 %v191, %v2280
  %v2332 = vmul.f32 %v192, %v2282
  %v2333 = vmul.f32 %v193, %v2284
  %v2334 = vmul.f32 %v194, %v2286
  %v2335 = vmul.f32 %v195, %v2288
  %v2336 = vmul.f32 %v196, %v2290
  %v2337 = vmul.f32 %v197, %v2292
  %v2338 = vmul.f32 %v198, %v2294
  %v2339 = vmul.f32 %v199, %v2296
  %v2340 = vmul.f32 %v200, %v2298
  %v2341 = vmul.f32 %v201, %v2300
  %v2342 = vmul.f32 %v202, %v2302
  %v2343 = vmul.f32 %v203, %v2304
  %v2344 = vmul.f32 %v204, %v2306
  %v2345 = vmul.f32 %v205, %v2308
  %v2346 = vmul.f32 %v206, %v2310
  %v2347 = vmul.f32 %v207, %v2312
  %v2348 = vmul.f32 %v208, %v2314
  %v2349 = vmul.f32 %v209, %v2316
  %v2350 = vmul.f32 %v210, %v2318
  %v2351 = vadd.f32 %v83, %v2319
  %v2352 = vadd.f32 %v84, %v2320
  %v2353 = vadd.f32 %v85, %v2321
  %v2354 = vadd.f32 %v86, %v2322
  %v2355 = vadd.f32 %v87, %v2323
  %v2356 = vadd.f32 %v88, %v2324
  %v2357 = vadd.f32 %v89, %v2325
  %v2358 = vadd.f32 %v90, %v2326
  %v2359 = vadd.f32 %v91, %v2327
  %v2360 = vadd.f32 %v92, %v2328
  %v2361 = vadd.f32 %v93, %v2329
  %v2362 = vadd.f32 %v94, %v2330
  %v2363 = vadd.f32 %v95, %v2331
  %v2364 = vadd.f32 %v96, %v2332
  %v2365 = vadd.f32 %v97, %v2333
  %v2366 = vadd.f32 %v98, %v2334
  %v2367 = vadd.f32 %v99, %v2335
  %v2368 = vadd.f32 %v100, %v2336
  %v2369 = vadd.f32 %v101, %v2337
  %v2370 = vadd.f32 %v102, %v2338
  %v2371 = vadd.f32 %v103, %v2339
  %v2372 = vadd.f32 %v104, %v2340
  %v2373 = vadd.f32 %v105, %v2341
  %v2374 = vadd.f32 %v106, %v2342
  %v2375 = vadd.f32 %v107, %v2343
  %v2376 = vadd.f32 %v108, %v2344
  %v2377 = vadd.f32 %v109, %v2345
  %v2378 = vadd.f32 %v110, %v2346
  %v2379 = vadd.f32 %v111, %v2347
  %v2380 = vadd.f32 %v112, %v2348
  %v2381 = vadd.f32 %v113, %v2349
  %v2382 = vadd.f32 %v114, %v2350
  %2383 = vst [vmem:[%s15] sm:$0xff] %v2351
  %2384 = vst [vmem:[%s15 + $0x8] sm:$0xff] %v2352
  %2385 = vst [vmem:[%s15 + $0x10] sm:$0xff] %v2353
  %2386 = vst [vmem:[%s15 + $0x18] sm:$0xff] %v2354
  %2387 = vst [vmem:[%s15 + $0x20] sm:$0xff] %v2355
  %2388 = vst [vmem:[%s15 + $0x28] sm:$0xff] %v2356
  %2389 = vst [vmem:[%s15 + $0x30] sm:$0xff] %v2357
  %2390 = vst [vmem:[%s15 + $0x38] sm:$0xff] %v2358
  %2391 = vst [vmem:[%s15 + $0x40] sm:$0xff] %v2359
  %2392 = vst [vmem:[%s15 + $0x48] sm:$0xff] %v2360
  %2393 = vst [vmem:[%s15 + $0x50] sm:$0xff] %v2361
  %2394 = vst [vmem:[%s15 + $0x58] sm:$0xff] %v2362
  %2395 = vst [vmem:[%s15 + $0x60] sm:$0xff] %v2363
  %2396 = vst [vmem:[%s15 + $0x68] sm:$0xff] %v2364
  %2397 = vst [vmem:[%s15 + $0x70] sm:$0xff] %v2365
  %2398 = vst [vmem:[%s15 + $0x78] sm:$0xff] %v2366
  %2399 = vst [vmem:[%s15 + $0x80] sm:$0xff] %v2367
  %2400 = vst [vmem:[%s15 + $0x88] sm:$0xff] %v2368
  %2401 = vst [vmem:[%s15 + $0x90] sm:$0xff] %v2369
  %2402 = vst [vmem:[%s15 + $0x98] sm:$0xff] %v2370
  %2403 = vst [vmem:[%s15 + $0xa0] sm:$0xff] %v2371
  %2404 = vst [vmem:[%s15 + $0xa8] sm:$0xff] %v2372
  %2405 = vst [vmem:[%s15 + $0xb0] sm:$0xff] %v2373
  %2406 = vst [vmem:[%s15 + $0xb8] sm:$0xff] %v2374
  %2407 = vst [vmem:[%s15 + $0xc0] sm:$0xff] %v2375
  %2408 = vst [vmem:[%s15 + $0xc8] sm:$0xff] %v2376
  %2409 = vst [vmem:[%s15 + $0xd0] sm:$0xff] %v2377
  %2410 = vst [vmem:[%s15 + $0xd8] sm:$0xff] %v2378
  %2411 = vst [vmem:[%s15 + $0xe0] sm:$0xff] %v2379
  %2412 = vst [vmem:[%s15 + $0xe8] sm:$0xff] %v2380
  %2413 = vst [vmem:[%s15 + $0xf0] sm:$0xff] %v2381
  %2414 = vst [vmem:[%s15 + $0xf8] sm:$0xff] %v2382
  // Predicated region
  $region62: #{iaff_forward.1} parent=0 // pred_check
    _
  $region63: #{iaff_forward.1} parent=0 // pred_check_branch
    %2416 = sbr.rel (0) target = $region65
  $region64: #{iaff_forward.1} parent=0 // pred_region
    _
  $region65: #{iaff_forward.1} parent=0 // pred_fallthru
    _
  // Predicated region
  $region66: #{iaff_forward.1} parent=0 // pred_check
    _
  $region67: #{iaff_forward.1} parent=0 // pred_check_branch
    %2418 = sbr.rel (0) target = $region69
  $region68: #{iaff_forward.1} parent=0 // pred_region
    _
  $region69: #{iaff_forward.1} parent=0 // pred_fallthru
    _

</llo_original>
